<compile_context>
chip_gen: v5e
topology: v5e:2x2
jax: 0.10.0
libtpu: 0.0.40
codegen_flags: <defaults>
</compile_context>

<pallas_src>
import functools
import numpy as np
import jax
import jax.numpy as jnp
from jax.experimental import pallas as pl
from jax.experimental.pallas import tpu as pltpu

BN_EPS = 1e-5
_VMEM_LIMIT = 32 * 1024 * 1024


def _round_up(a, m):
    return ((a + m - 1) // m) * m


def _select_tm(M, cap=512):
    """Pick an M tile: full M if it fits in one tile, else the largest exact
    divisor of M that is a multiple of 16 (no padded HBM copy of x).  Falls
    back to padding only if no such divisor exists."""
    if M <= cap:
        return M, M
    tm = (cap // 16) * 16
    while tm >= 16:
        if M % tm == 0:
            return tm, M
        tm -= 16
    tm = 256
    return tm, _round_up(M, tm)


# ----------------------------------------------------------------------------
# Pallas kernels
# ----------------------------------------------------------------------------
def _mm_kernel_single(x_ref, w_ref, s_ref, b_ref, o_ref, *, act):
    """Single-K-step matmul: bf16 operands on the MXU, result written directly
    (no accumulator scratch), fused scale/shift (folded BN / bias) + act."""
    y = jnp.dot(x_ref[0], w_ref[0], preferred_element_type=jnp.float32)
    y = y * s_ref[0] + b_ref[0]
    if act == "relu":
        y = jnp.maximum(y, 0.0)
    elif act == "sigmoid":
        y = jax.nn.sigmoid(y)
    o_ref[0] = y.astype(o_ref.dtype)


def _mm_kernel_multi(x_ref, w_ref, s_ref, b_ref, o_ref, acc_ref, *, act):
    """Multi-K-step matmul with f32 accumulator scratch (only used if K>2048)."""
    @pl.when(pl.program_id(3) == 0)
    def _():
        acc_ref[...] = jnp.zeros_like(acc_ref)

    acc_ref[...] += jnp.dot(x_ref[0], w_ref[0],
                            preferred_element_type=jnp.float32)

    @pl.when(pl.program_id(3) == pl.num_programs(3) - 1)
    def _():
        y = acc_ref[...] * s_ref[0] + b_ref[0]
        if act == "relu":
            y = jnp.maximum(y, 0.0)
        elif act == "sigmoid":
            y = jax.nn.sigmoid(y)
        o_ref[0] = y.astype(o_ref.dtype)


_MM_SINGLE_K = {a: functools.partial(_mm_kernel_single, act=a)
                for a in ("none", "relu", "sigmoid")}
_MM_MULTI_K = {a: functools.partial(_mm_kernel_multi, act=a)
               for a in ("none", "relu", "sigmoid")}


def _gap_kernel(x_ref, o_ref):
    """Global average pool over the spatial axis: (1, HW, C) -> (1, 1, C), f32."""
    o_ref[...] = jnp.mean(x_ref[...].astype(jnp.float32), axis=1, keepdims=True)


def _se_block_kernel(x_ref, r_ref, w1_ref, b1_ref, w2_ref, b2_ref, o_ref):
    """Fused SE module + residual + relu for one batch element:
       gate = sigmoid(fc2(relu(fc1(mean_hw(x)))));  out = relu(x * gate + r)."""
    x = x_ref[0]                                   # (HW, C) bf16
    hw = x.shape[0]
    pooled = jnp.sum(x.astype(jnp.float32), axis=0, keepdims=True) * (1.0 / hw)
    # Broadcast the pooled row to 8 sublanes so the tiny FC matmuls stay on a
    # friendly MXU shape; all rows are identical, row 0 is used.
    p8 = jnp.broadcast_to(pooled, (8, pooled.shape[1])).astype(jnp.bfloat16)
    h = jnp.dot(p8, w1_ref[...], preferred_element_type=jnp.float32) + b1_ref[...]
    h = jnp.maximum(h, 0.0)
    g = jnp.dot(h.astype(jnp.bfloat16), w2_ref[...],
                preferred_element_type=jnp.float32) + b2_ref[...]
    gate = jax.nn.sigmoid(g)[0:1]                  # (1, C) f32
    y = x.astype(jnp.float32) * gate + r_ref[0].astype(jnp.float32)
    o_ref[0] = jnp.maximum(y, 0.0).astype(o_ref.dtype)


def _maxpool_kernel(ee_ref, eo_ref, oe_ref, oo_ref, o_ref):
    """3x3 / stride-2 max from even/odd row-col planes of the padded input."""
    ee = ee_ref[0]      # (Ho+1, Wo+1, C)
    eo = eo_ref[0]      # (Ho+1, Wo,   C)
    oe = oe_ref[0]      # (Ho,   Wo+1, C)
    oo = oo_ref[0]      # (Ho,   Wo,   C)
    Ho, Wo = oo.shape[0], oo.shape[1]
    y = oo
    y = jnp.maximum(y, ee[:Ho, :Wo])
    y = jnp.maximum(y, ee[:Ho, 1:Wo + 1])
    y = jnp.maximum(y, ee[1:Ho + 1, :Wo])
    y = jnp.maximum(y, ee[1:Ho + 1, 1:Wo + 1])
    y = jnp.maximum(y, eo[:Ho, :])
    y = jnp.maximum(y, eo[1:Ho + 1, :])
    y = jnp.maximum(y, oe[:, :Wo])
    y = jnp.maximum(y, oe[:, 1:Wo + 1])
    o_ref[0] = y


# ----------------------------------------------------------------------------
# Pallas wrappers
# ----------------------------------------------------------------------------
def matmul_scale_act(x, w, scale, shift, act, out_dtype=jnp.bfloat16):
    """(B, M, K) @ (B, K, N) * scale[B, N] + shift[B, N], then activation.
    bf16 operands, f32 accumulation; fused epilogue."""
    B, M, K = x.shape
    N = w.shape[-1]
    x = x.astype(jnp.bfloat16)
    w = w.astype(jnp.bfloat16)
    scale = scale.astype(jnp.float32).reshape(B, 1, N)
    shift = shift.astype(jnp.float32).reshape(B, 1, N)

    # --- tile selection ---
    TM, Mp = _select_tm(M)                 # exact-divisor M tiles (no x pad)
    if K <= 2048:                          # full-K single step (whole network)
        TK, Kp = K, K
    else:
        TK, Kp = 512, _round_up(K, 512)
    if N % 256 == 0:                       # lane-dense output stores
        TN, Np = 256, N
    elif N % 128 == 0:
        TN, Np = 128, N
    else:
        TN, Np = 128, _round_up(N, 128)    # pad narrow outputs to a full lane

    if (Mp, Kp) != (M, K):
        x = jnp.pad(x, ((0, 0), (0, Mp - M), (0, Kp - K)))
    if (Kp, Np) != (K, N):
        w = jnp.pad(w, ((0, 0), (0, Kp - K), (0, Np - N)))
    if Np != N:
        scale = jnp.pad(scale, ((0, 0), (0, 0), (0, Np - N)))
        shift = jnp.pad(shift, ((0, 0), (0, 0), (0, Np - N)))

    if Kp == TK:   # single K step: no accumulator scratch, direct store
        out = pl.pallas_call(
            _MM_SINGLE_K[act],
            out_shape=jax.ShapeDtypeStruct((B, Mp, Np), out_dtype),
            grid_spec=pltpu.PrefetchScalarGridSpec(
                num_scalar_prefetch=0,
                grid=(B, Mp // TM, Np // TN),
                in_specs=[
                    pl.BlockSpec((1, TM, TK), lambda b, i, j: (b, i, 0)),
                    pl.BlockSpec((1, TK, TN), lambda b, i, j: (b, 0, j)),
                    pl.BlockSpec((1, 1, TN), lambda b, i, j: (b, 0, j)),
                    pl.BlockSpec((1, 1, TN), lambda b, i, j: (b, 0, j)),
                ],
                out_specs=pl.BlockSpec((1, TM, TN), lambda b, i, j: (b, i, j)),
            ),
            compiler_params=pltpu.CompilerParams(
                dimension_semantics=("parallel", "parallel", "parallel"),
                vmem_limit_bytes=_VMEM_LIMIT),
        )(x, w, scale, shift)
    else:
        out = pl.pallas_call(
            _MM_MULTI_K[act],
            out_shape=jax.ShapeDtypeStruct((B, Mp, Np), out_dtype),
            grid_spec=pltpu.PrefetchScalarGridSpec(
                num_scalar_prefetch=0,
                grid=(B, Mp // TM, Np // TN, Kp // TK),
                in_specs=[
                    pl.BlockSpec((1, TM, TK), lambda b, i, j, k: (b, i, k)),
                    pl.BlockSpec((1, TK, TN), lambda b, i, j, k: (b, k, j)),
                    pl.BlockSpec((1, 1, TN), lambda b, i, j, k: (b, 0, j)),
                    pl.BlockSpec((1, 1, TN), lambda b, i, j, k: (b, 0, j)),
                ],
                out_specs=pl.BlockSpec((1, TM, TN), lambda b, i, j, k: (b, i, j)),
                scratch_shapes=[pltpu.VMEM((TM, TN), jnp.float32)],
            ),
            compiler_params=pltpu.CompilerParams(
                dimension_semantics=("parallel", "parallel", "parallel", "arbitrary"),
                vmem_limit_bytes=_VMEM_LIMIT),
        )(x, w, scale, shift)

    if (Mp, Np) != (M, N):
        out = out[:, :M, :N]
    return out


def matmul2d(x, w, scale, shift, act, out_dtype=jnp.bfloat16):
    """(M, K) @ (K, N) with fused scale/shift + activation."""
    return matmul_scale_act(x[None], w[None], scale[None], shift[None],
                            act, out_dtype)[0]


def global_avg_pool(x_flat):
    """x_flat: (N, HW, C) -> (N, C) mean over HW (f32 output)."""
    N, HW, C = x_flat.shape
    out = pl.pallas_call(
        _gap_kernel,
        out_shape=jax.ShapeDtypeStruct((N, 1, C), jnp.float32),
        grid_spec=pltpu.PrefetchScalarGridSpec(
            num_scalar_prefetch=0,
            grid=(N,),
            in_specs=[pl.BlockSpec((1, HW, C), lambda n: (n, 0, 0))],
            out_specs=pl.BlockSpec((1, 1, C), lambda n: (n, 0, 0)),
        ),
        compiler_params=pltpu.CompilerParams(
            dimension_semantics=("parallel",),
            vmem_limit_bytes=_VMEM_LIMIT),
    )(x_flat)
    return out.reshape(N, C)


def se_bottleneck_epilogue(out_flat, residual_flat, w1, b1, w2, b2):
    """Fused SE module + residual add + relu; one pallas_call per block,
    grid over batch, SE FC weights resident in VMEM."""
    N, HW, C = out_flat.shape
    Cr = w1.shape[-1]
    out = pl.pallas_call(
        _se_block_kernel,
        out_shape=jax.ShapeDtypeStruct((N, HW, C), jnp.bfloat16),
        grid_spec=pltpu.PrefetchScalarGridSpec(
            num_scalar_prefetch=0,
            grid=(N,),
            in_specs=[
                pl.BlockSpec((1, HW, C), lambda n: (n, 0, 0)),
                pl.BlockSpec((1, HW, C), lambda n: (n, 0, 0)),
                pl.BlockSpec((C, Cr), lambda n: (0, 0)),
                pl.BlockSpec((1, Cr), lambda n: (0, 0)),
                pl.BlockSpec((Cr, C), lambda n: (0, 0)),
                pl.BlockSpec((1, C), lambda n: (0, 0)),
            ],
            out_specs=pl.BlockSpec((1, HW, C), lambda n: (n, 0, 0)),
        ),
        compiler_params=pltpu.CompilerParams(
            dimension_semantics=("parallel",),
            vmem_limit_bytes=_VMEM_LIMIT),
    )(out_flat.astype(jnp.bfloat16), residual_flat.astype(jnp.bfloat16),
      w1, b1, w2, b2)
    return out


def maxpool_3x3_s2_ceil(x):
    """nn.MaxPool2d(3, stride=2, ceil_mode=True) on NHWC."""
    N, H, W, C = x.shape
    Ho = -(-(H - 3) // 2) + 1
    Wo = -(-(W - 3) // 2) + 1
    Hp, Wp = 2 * Ho + 1, 2 * Wo + 1
    xp = jnp.pad(x, ((0, 0), (0, Hp - H), (0, Wp - W), (0, 0)),
                 constant_values=-jnp.inf)
    ee = xp[:, 0::2, 0::2, :]   # (N, Ho+1, Wo+1, C)
    eo = xp[:, 0::2, 1::2, :]   # (N, Ho+1, Wo,   C)
    oe = xp[:, 1::2, 0::2, :]   # (N, Ho,   Wo+1, C)
    oo = xp[:, 1::2, 1::2, :]   # (N, Ho,   Wo,   C)
    out = pl.pallas_call(
        _maxpool_kernel,
        out_shape=jax.ShapeDtypeStruct((N, Ho, Wo, C), x.dtype),
        grid_spec=pltpu.PrefetchScalarGridSpec(
            num_scalar_prefetch=0,
            grid=(N,),
            in_specs=[
                pl.BlockSpec((1, Ho + 1, Wo + 1, C), lambda n: (n, 0, 0, 0)),
                pl.BlockSpec((1, Ho + 1, Wo, C), lambda n: (n, 0, 0, 0)),
                pl.BlockSpec((1, Ho, Wo + 1, C), lambda n: (n, 0, 0, 0)),
                pl.BlockSpec((1, Ho, Wo, C), lambda n: (n, 0, 0, 0)),
            ],
            out_specs=pl.BlockSpec((1, Ho, Wo, C), lambda n: (n, 0, 0, 0)),
        ),
        compiler_params=pltpu.CompilerParams(
            dimension_semantics=("parallel",),
            vmem_limit_bytes=_VMEM_LIMIT),
    )(ee, eo, oe, oo)
    return out


# ----------------------------------------------------------------------------
# Conv-as-matmul glue (bf16 im2col in JAX, fused matmul in Pallas)
# ----------------------------------------------------------------------------
def _extract_patch_taps(x, k, stride, pad):
    """im2col taps as (N, Ho, Wo, k*k, C) in bf16."""
    N, H, W, C = x.shape
    Ho = (H + 2 * pad - k) // stride + 1
    Wo = (W + 2 * pad - k) // stride + 1
    xp = jnp.pad(x, ((0, 0), (pad, pad), (pad, pad), (0, 0))) if pad else x
    taps = []
    for kh in range(k):
        for kw in range(k):
            taps.append(xp[:, kh:kh + stride * (Ho - 1) + 1:stride,
                           kw:kw + stride * (Wo - 1) + 1:stride, :])
    return jnp.stack(taps, axis=3), Ho, Wo


def conv_bn_act(x, cv, act):
    """Conv2d (bias-free, weights prepared in dense matmul layout — grouped
    convs block-diagonalized at prepare time) + folded BN + activation."""
    x = x.astype(jnp.bfloat16)
    k, stride, pad = cv["k"], cv["stride"], cv["pad"]
    Cout = cv["cout"]
    N, H, W, Cin = x.shape

    if k == 1 and pad == 0:
        if stride > 1:
            x = x[:, ::stride, ::stride, :]
        N, Ho, Wo, _ = x.shape
        y = matmul_scale_act(x.reshape(1, N * Ho * Wo, Cin), cv["w"][None],
                             cv["scale"][None], cv["shift"][None], act)
        return y.reshape(N, Ho, Wo, Cout)

    taps, Ho, Wo = _extract_patch_taps(x, k, stride, pad)
    M = N * Ho * Wo
    pm = taps.reshape(1, M, k * k * Cin)
    y = matmul_scale_act(pm, cv["w"][None], cv["scale"][None],
                         cv["shift"][None], act)
    return y.reshape(N, Ho, Wo, Cout)


def fold_bn(bn):
    scale = bn["gamma"] / jnp.sqrt(bn["var"] + BN_EPS)
    shift = bn["beta"] - bn["mean"] * scale
    return scale, shift


def _prep_conv(w, scale, shift, stride, pad, groups):
    """One-time OIHW -> dense matmul-layout weight conversion (bf16) + folded BN.
    Grouped convs become a block-diagonal dense weight (K = k*k*Cin, N = Cout)
    so the conv runs as one lane-dense matmul on the MXU."""
    Cout, cin_g, k, _ = w.shape
    if groups == 1:
        wm = jnp.transpose(w, (2, 3, 1, 0)).reshape(k * k * cin_g, Cout)
    else:
        G = groups
        og = Cout // G
        Cin = cin_g * G
        wg = jnp.transpose(w.reshape(G, og, cin_g, k, k), (3, 4, 0, 2, 1))  # (k,k,G,cg,og)
        eye = jnp.eye(G, dtype=w.dtype)
        dense = jnp.einsum("hwgco,gf->hwgcfo", wg, eye)                     # (k,k,G,cg,G,og)
        wm = dense.reshape(k * k * Cin, Cout)
    return dict(w=wm.astype(jnp.bfloat16), scale=scale.astype(jnp.float32),
                shift=shift.astype(jnp.float32), k=k, stride=stride, pad=pad,
                cout=Cout)


def prepare_params(params):
    """Fold BN stats and convert every conv weight to matmul layout once."""
    prep = {"layer0": []}
    for c in params["layer0"]:
        s, b = fold_bn(c["bn"])
        prep["layer0"].append(_prep_conv(c["w"], s, b, c["stride"], c["pad"], 1))
    prep["layers"] = []
    for blocks in params["layers"]:
        pblocks = []
        for bp in blocks:
            s1, b1 = fold_bn(bp["bn1"])
            s2, b2 = fold_bn(bp["bn2"])
            s3, b3 = fold_bn(bp["bn3"])
            Cr = bp["se_fc1_w"].shape[0]
            C = bp["se_fc2_w"].shape[0]
            pb = dict(
                conv1=_prep_conv(bp["conv1_w"], s1, b1, 1, 0, 1),
                conv2=_prep_conv(bp["conv2_w"], s2, b2, bp["stride"], 1, bp["groups"]),
                conv3=_prep_conv(bp["conv3_w"], s3, b3, 1, 0, 1),
                se_fc1_w=bp["se_fc1_w"][:, :, 0, 0].T.astype(jnp.bfloat16),   # (C, Cr)
                se_fc1_b=bp["se_fc1_b"].astype(jnp.float32).reshape(1, Cr),
                se_fc2_w=bp["se_fc2_w"][:, :, 0, 0].T.astype(jnp.bfloat16),   # (Cr, C)
                se_fc2_b=bp["se_fc2_b"].astype(jnp.float32).reshape(1, C),
            )
            if "ds_w" in bp:
                ds_s, ds_b = fold_bn(bp["ds_bn"])
                pb["downsample"] = _prep_conv(bp["ds_w"], ds_s, ds_b,
                                              bp["ds_stride"], bp["ds_pad"], 1)
            pblocks.append(pb)
        prep["layers"].append(pblocks)
    prep["fc_w"] = params["fc_w"].T.astype(jnp.bfloat16)
    prep["fc_b"] = params["fc_b"].astype(jnp.float32)
    return prep


# ----------------------------------------------------------------------------
# Parameter init (deterministic, synthetic)
# ----------------------------------------------------------------------------
def _conv_w(key, cout, cin_g, k):
    fan_in = cin_g * k * k
    return jax.random.normal(key, (cout, cin_g, k, k), jnp.float32) * np.sqrt(2.0 / fan_in)


def _bn_params(key, c):
    k1, k2, k3, k4 = jax.random.split(key, 4)
    return dict(gamma=1.0 + 0.1 * jax.random.normal(k1, (c,), jnp.float32),
                beta=0.05 * jax.random.normal(k2, (c,), jnp.float32),
                mean=0.05 * jax.random.normal(k3, (c,), jnp.float32),
                var=1.0 + 0.5 * jax.random.uniform(k4, (c,), jnp.float32))


def init_senet_params(key, *, layers, groups, reduction, inplanes, input_3x3,
                      downsample_kernel_size, downsample_padding, num_classes,
                      base_width=4, expansion=4):
    keys = iter(jax.random.split(key, 1024))
    nk = lambda: next(keys)
    params = {}

    layer0 = []
    if input_3x3:
        layer0.append(dict(w=_conv_w(nk(), 64, 3, 3), bn=_bn_params(nk(), 64), stride=2, pad=1))
        layer0.append(dict(w=_conv_w(nk(), 64, 64, 3), bn=_bn_params(nk(), 64), stride=1, pad=1))
        layer0.append(dict(w=_conv_w(nk(), inplanes, 64, 3), bn=_bn_params(nk(), inplanes), stride=1, pad=1))
    else:
        layer0.append(dict(w=_conv_w(nk(), inplanes, 3, 7), bn=_bn_params(nk(), inplanes), stride=2, pad=3))
    params["layer0"] = layer0

    in_c = inplanes
    plan = [(64, layers[0], 1, 1, 0),
            (128, layers[1], 2, downsample_kernel_size, downsample_padding),
            (256, layers[2], 2, downsample_kernel_size, downsample_padding),
            (512, layers[3], 2, downsample_kernel_size, downsample_padding)]
    all_layers = []
    for planes, nblocks, stride, dsk, dsp in plan:
        blocks = []
        for bi in range(nblocks):
            s = stride if bi == 0 else 1
            width = (planes * base_width // 64) * groups          # SEResNeXtBottleneck width
            out_c = planes * expansion
            bp = dict(
                conv1_w=_conv_w(nk(), width, in_c, 1), bn1=_bn_params(nk(), width),
                conv2_w=_conv_w(nk(), width, width // groups, 3), bn2=_bn_params(nk(), width),
                conv3_w=_conv_w(nk(), out_c, width, 1), bn3=_bn_params(nk(), out_c),
                se_fc1_w=_conv_w(nk(), out_c // reduction, out_c, 1),
                se_fc1_b=0.05 * jax.random.normal(nk(), (out_c // reduction,), jnp.float32),
                se_fc2_w=_conv_w(nk(), out_c, out_c // reduction, 1),
                se_fc2_b=0.05 * jax.random.normal(nk(), (out_c,), jnp.float32),
                stride=s, groups=groups)
            if bi == 0 and (stride != 1 or in_c != out_c):
                bp["ds_w"] = _conv_w(nk(), out_c, in_c, dsk)
                bp["ds_bn"] = _bn_params(nk(), out_c)
                bp["ds_stride"] = s
                bp["ds_pad"] = dsp
            blocks.append(bp)
            in_c = out_c
        all_layers.append(blocks)
    params["layers"] = all_layers

    params["fc_w"] = jax.random.normal(nk(), (num_classes, in_c), jnp.float32) / np.sqrt(in_c)
    params["fc_b"] = 0.05 * jax.random.normal(nk(), (num_classes,), jnp.float32)
    return params


# ----------------------------------------------------------------------------
# Forward pass
# ----------------------------------------------------------------------------
def bottleneck_forward(x, pb):
    out = conv_bn_act(x, pb["conv1"], "relu")
    out = conv_bn_act(out, pb["conv2"], "relu")
    out = conv_bn_act(out, pb["conv3"], "none")

    if "downsample" in pb:
        residual = conv_bn_act(x, pb["downsample"], "none")
    else:
        residual = x

    # Fused SE module + residual add + relu (single Pallas kernel per block).
    N, H, W, C = out.shape
    out = se_bottleneck_epilogue(out.reshape(N, H * W, C),
                                 residual.reshape(N, H * W, C),
                                 pb["se_fc1_w"], pb["se_fc1_b"],
                                 pb["se_fc2_w"], pb["se_fc2_b"])
    return out.reshape(N, H, W, C)


def senet_forward(x_nchw, prep):
    # PyTorch NCHW input -> NHWC (bf16 activations) for the kernels.
    x = jnp.transpose(x_nchw, (0, 2, 3, 1)).astype(jnp.bfloat16)

    # layer0: conv/bn/relu stack + MaxPool2d(3, stride=2, ceil_mode=True)
    for cv in prep["layer0"]:
        x = conv_bn_act(x, cv, "relu")
    x = maxpool_3x3_s2_ceil(x)

    # layer1..layer4
    for blocks in prep["layers"]:
        for pb in blocks:
            x = bottleneck_forward(x, pb)

    # logits: AvgPool2d(7, stride=1) (7x7 spatial -> global mean), dropout (eval
    # identity), flatten, Linear.
    N, H, W, C = x.shape
    assert H == 7 and W == 7, "final feature map must be 7x7 (input 224x224)"
    feat = global_avg_pool(x.reshape(N, H * W, C))                       # (N, C) f32
    # TODO(synk): Dropout(p=0.2) is an eval-mode identity; RNG dropout not reproduced.
    num_classes = prep["fc_w"].shape[-1]
    logits = matmul2d(feat, prep["fc_w"], jnp.ones((num_classes,), jnp.float32),
                      prep["fc_b"], "none", out_dtype=jnp.float32)
    return logits


# ----------------------------------------------------------------------------
if __name__ == "__main__":
    key = jax.random.PRNGKey(0)
    pkey, xkey = jax.random.split(key)

    # Small synthetic SE-ResNeXt configuration (block expansion=4, base_width=4):
    # layers=[1,1,1,1], groups=2, reduction=4, num_classes=16.  Spatial input must
    # be 224 because of the hard-coded AvgPool2d(7) after a /32 downsample.
    cfg = dict(layers=[1, 1, 1, 1], groups=2, reduction=4, inplanes=64,
               input_3x3=False, downsample_kernel_size=1, downsample_padding=0,
               num_classes=16)
    params = init_senet_params(pkey, **cfg)
    prep = prepare_params(params)

    x = jax.random.normal(xkey, (2, 3, 224, 224), jnp.float32)
    logits = senet_forward(x, prep)
    logits = jax.block_until_ready(logits)

    assert logits.shape == (2, cfg["num_classes"]), logits.shape
    assert bool(jnp.all(jnp.isfinite(logits)))
    print("KERNEL_OK")
</pallas_src>

<mosaic_0001>
module attributes {stable_mosaic.version = 11 : i64} {
  func.func @_mm_kernel_single(%arg0: i32, %arg1: i32, %arg2: i32, %arg3: memref<1x512x147xbf16, #tpu.memory_space<vmem>>, %arg4: memref<1x147x128xbf16, #tpu.memory_space<vmem>>, %arg5: memref<1x1x128xf32, #tpu.memory_space<vmem>>, %arg6: memref<1x1x128xf32, #tpu.memory_space<vmem>>, %arg7: memref<1x512x128xbf16, #tpu.memory_space<vmem>>) attributes {dimension_semantics = [#tpu.dimension_semantics<parallel>, #tpu.dimension_semantics<parallel>, #tpu.dimension_semantics<parallel>], iteration_bounds = array<i64: 1, 49, 1>, scalar_prefetch = 0 : i64, scratch_operands = 0 : i64, tpu.core_type = #tpu.core_type<tc>, window_params = [{transform_indices = @transform_0, window_bounds = array<i64: 1, 512, 147>}, {transform_indices = @transform_1, window_bounds = array<i64: 1, 147, 128>}, {transform_indices = @transform_2, window_bounds = array<i64: 1, 1, 128>}, {transform_indices = @transform_3, window_bounds = array<i64: 1, 1, 128>}, {transform_indices = @transform_4, window_bounds = array<i64: 1, 512, 128>}]} {
    %c0 = arith.constant 0 : index
    %c0_0 = arith.constant 0 : index
    %c0_1 = arith.constant 0 : index
    %0 = vector.load %arg3[%c0, %c0_0, %c0_1] : memref<1x512x147xbf16, #tpu.memory_space<vmem>>, vector<1x512x147xbf16>
    %1 = vector.shape_cast %0 : vector<1x512x147xbf16> to vector<512x147xbf16>
    %c0_2 = arith.constant 0 : index
    %c0_3 = arith.constant 0 : index
    %c0_4 = arith.constant 0 : index
    %2 = vector.load %arg4[%c0_2, %c0_3, %c0_4] : memref<1x147x128xbf16, #tpu.memory_space<vmem>>, vector<1x147x128xbf16>
    %3 = vector.shape_cast %2 : vector<1x147x128xbf16> to vector<147x128xbf16>
    %cst = arith.constant dense<0.000000e+00> : vector<512x128xf32>
    %4 = tpu.matmul %1, %3, %cst {dimension_numbers = #tpu.dot_dimension_numbers<[1], [0], [0], [1], [0, 0, 1, 1], [], []>} : vector<512x147xbf16>, vector<147x128xbf16>, vector<512x128xf32> -> vector<512x128xf32>
    %c0_5 = arith.constant 0 : index
    %c0_6 = arith.constant 0 : index
    %c0_7 = arith.constant 0 : index
    %5 = vector.load %arg5[%c0_5, %c0_6, %c0_7] : memref<1x1x128xf32, #tpu.memory_space<vmem>>, vector<1x1x128xf32>
    %6 = vector.shape_cast %5 : vector<1x1x128xf32> to vector<1x128xf32>
    %7 = vector.broadcast %6 : vector<1x128xf32> to vector<512x128xf32>
    %8 = arith.mulf %4, %7 : vector<512x128xf32>
    %c0_8 = arith.constant 0 : index
    %c0_9 = arith.constant 0 : index
    %c0_10 = arith.constant 0 : index
    %9 = vector.load %arg6[%c0_8, %c0_9, %c0_10] : memref<1x1x128xf32, #tpu.memory_space<vmem>>, vector<1x1x128xf32>
    %10 = vector.shape_cast %9 : vector<1x1x128xf32> to vector<1x128xf32>
    %11 = vector.broadcast %10 : vector<1x128xf32> to vector<512x128xf32>
    %12 = arith.addf %8, %11 : vector<512x128xf32>
    %cst_11 = arith.constant 0.000000e+00 : f32
    %13 = vector.broadcast %cst_11 : f32 to vector<512x128xf32>
    %14 = arith.maximumf %12, %13 : vector<512x128xf32>
    %15 = arith.truncf %14 : vector<512x128xf32> to vector<512x128xbf16>
    %c0_12 = arith.constant 0 : index
    %c0_13 = arith.constant 0 : index
    %c0_14 = arith.constant 0 : index
    %16 = vector.load %arg7[%c0_12, %c0_13, %c0_14] : memref<1x512x128xbf16, #tpu.memory_space<vmem>>, vector<1x512x128xbf16>
    %17 = vector.shape_cast %16 : vector<1x512x128xbf16> to vector<512x128xbf16>
    %18 = vector.shape_cast %15 : vector<512x128xbf16> to vector<1x512x128xbf16>
    tpu.vector_store %arg7[%c0_12, %c0_13, %c0_14], %18 {strides = array<i32>} : memref<1x512x128xbf16, #tpu.memory_space<vmem>>, vector<1x512x128xbf16>,
    return
  }
  func.func @transform_0(%arg0: i32, %arg1: i32, %arg2: i32) -> (i32, i32, i32) {
    %c0_i32 = arith.constant 0 : i32
    %c0_i32_0 = arith.constant 0 : i32
    return %arg0, %arg1, %c0_i32 : i32, i32, i32
  }
  func.func @transform_1(%arg0: i32, %arg1: i32, %arg2: i32) -> (i32, i32, i32) {
    %c0_i32 = arith.constant 0 : i32
    %c0_i32_0 = arith.constant 0 : i32
    return %arg0, %c0_i32, %arg2 : i32, i32, i32
  }
  func.func @transform_2(%arg0: i32, %arg1: i32, %arg2: i32) -> (i32, i32, i32) {
    %c0_i32 = arith.constant 0 : i32
    %c0_i32_0 = arith.constant 0 : i32
    return %arg0, %c0_i32, %arg2 : i32, i32, i32
  }
  func.func @transform_3(%arg0: i32, %arg1: i32, %arg2: i32) -> (i32, i32, i32) {
    %c0_i32 = arith.constant 0 : i32
    %c0_i32_0 = arith.constant 0 : i32
    return %arg0, %c0_i32, %arg2 : i32, i32, i32
  }
  func.func @transform_4(%arg0: i32, %arg1: i32, %arg2: i32) -> (i32, i32, i32) {
    %c0_i32 = arith.constant 0 : i32
    return %arg0, %arg1, %arg2 : i32, i32, i32
  }
}

</mosaic_0001>

<llo_original>
// kernel: tpu_custom_call.1
$region0: #{tpu_custom_call.1}
  #allocation0 [shape = 'u32[]', space=smem, size = 0x4, offset = 0x4, fixed_abs, tag = 'smem constant byte address 0x4 - core index']
  #allocation1 [shape = 'u32[72,128]{1,0:T(1,128)}', space=vmem, size = 0x9000, scoped, tag = 'internal scratch']
  %s0 = inlined_call_operand.vmem [shape: bf16[1,25088,147], index: 0, kind: input, shape index: {}]
  %s1 = inlined_call_operand.vmem [shape: bf16[1,147,128], index: 1, kind: input, shape index: {}]
  %s2 = inlined_call_operand.vmem [shape: f32[1,1,128], index: 2, kind: input, shape index: {}]
  %s3 = inlined_call_operand.vmem [shape: f32[1,1,128], index: 3, kind: input, shape index: {}]
  %s4 = inlined_call_operand.hbm [shape: bf16[1,25088,128], index: 4, kind: output, shape index: {}]
  %s5 = sld [smem:[#allocation0]]
  $region49: #{tpu_custom_call.1} parent=0
    _
  %s7 = ssub.s32 1, %s5
  %s8 = scalar_select 0, %s7, %s5
  $region1: #{tpu_custom_call.1} parent=0
    #allocation2 [shape = 'u8[262144]{0}', space=vmem, size = 0x40000, scoped, tag = 'output window, operand 0']
    #allocation3 [shape = 's32[2]{0}', space=sflag, size = 0x8, scoped, tag = 'scoped memory for tpu_custom_call.1']
    %9 = vsyncpa [#allocation3], 0
    %s10 = scalar_lea.sflag [#allocation3], 1
    %11 = vsyncpa %s10, 0
    loop: start=0, step=1, limit=51
    $region2: #{tpu_custom_call.1} parent=1 // loop_pre_header
      _
    $region3: #{tpu_custom_call.1} parent=1 // loop_header
      %s13 = sphi 0, %s17
      %p14 = scmp.ge.s32.totalorder %s13, 51
      %s20 = sphi 0, %s39
      %s21 = sphi 0, %s35
      %s22 = sphi 0, %s31
      %s23 = sphi 0, %s20
      %s24 = sphi 0, %s21
      %s25 = sphi 0, %s22
      %s26 = sphi 0, %s23
      %s27 = sphi 0, %s24
      %s28 = sphi 0, %s25
      %s44 = sphi 0, %s46
      %s47 = sphi 0, %s44
      %s48 = sphi 0, %s47
      %s64 = sphi 0, %s48
      %s72 = sphi 0, %s74
      %s75 = sphi 0, %s72
      %s76 = sphi 0, %s75
      %s92 = sphi 0, %s76
      %s100 = sphi 0, %s102
      %s103 = sphi 0, %s100
      %s104 = sphi 0, %s103
      %s120 = sphi 0, %s104
      %s128 = sphi 0, %s130
      %s131 = sphi 0, %s128
      %s132 = sphi 0, %s131
      %s148 = sphi 0, %s132
      %s158 = sphi 0, %s160
      %s161 = sphi 0, %s158
      %s162 = sphi 0, %s161
      %s178 = sphi 0, %s162
    $region4: #{tpu_custom_call.1} parent=1 // loop_header_branch
      %16 = sbr.rel (%p14) target = $region8
    $region5: #{tpu_custom_call.1} parent=1 // loop_body
      %s18 = ssub.s32 %s13, 1
      %s19 = ssub.s32 %s13, 2
      %s29 = sadd.s32 1, %s22
      %p30 = scmp.ge.s32.totalorder %s29, 1
      %s31 = scalar_select %p30, 0, %s29
      %s32 = sadd.s32 1, %s21
      %s33 = scalar_select %p30, %s32, %s21
      %p34 = scmp.ge.s32.totalorder %s33, 49
      %s35 = scalar_select %p34, 0, %s33
      %s36 = sadd.s32 1, %s20
      %s37 = scalar_select %p34, %s36, %s20
      %p38 = scmp.ge.s32.totalorder %s37, 1
      %s39 = scalar_select %p38, 0, %s37
      %s40 = ssub.s32 %s20, %s39
      %s41 = ssub.s32 %s21, %s35
      %s42 = sor.u32 %s40, %s41
      %p43 = scmp.eq.s32.totalorder %s42, 0
      %s45 = sadd.s32 %s44, 1
      %s46 = scalar_select %p43, %s44, %s45
      %p49 = pneg %p43
      %p50 = scmp.eq.s32.totalorder %s13, 48
      %p51 = por %p49, %p50
      %p52 = scmp.ne.s32.totalorder %s44, %s47
      %p53 = scmp.eq.s32.totalorder %s13, 0
      %p54 = por %p52, %p53
      %p55 = scmp.ne.s32.totalorder %s44, %s47
      %p56 = scmp.eq.s32.totalorder %s18, 48
      %p57 = por %p55, %p56
      %p58 = scmp.ne.s32.totalorder %s47, %s48
      %p59 = scmp.eq.s32.totalorder %s18, 0
      %p60 = por %p58, %p59
      %p61 = scmp.ne.s32.totalorder %s47, %s48
      %p62 = scmp.eq.s32.totalorder %s19, 48
      %p63 = por %p61, %p62
      %p65 = scmp.ne.s32.totalorder %s48, %s64
      %p66 = scmp.eq.s32.totalorder %s19, 0
      %p67 = por %p65, %p66
      %s68 = ssub.s32 %s20, %s39
      %s69 = ssub.s32 %s22, %s31
      %s70 = sor.u32 %s68, %s69
      %p71 = scmp.eq.s32.totalorder %s70, 0
      %s73 = sadd.s32 %s72, 1
      %s74 = scalar_select %p71, %s72, %s73
      %p77 = pneg %p71
      %p78 = scmp.eq.s32.totalorder %s13, 48
      %p79 = por %p77, %p78
      %p80 = scmp.ne.s32.totalorder %s72, %s75
      %p81 = scmp.eq.s32.totalorder %s13, 0
      %p82 = por %p80, %p81
      %p83 = scmp.ne.s32.totalorder %s72, %s75
      %p84 = scmp.eq.s32.totalorder %s18, 48
      %p85 = por %p83, %p84
      %p86 = scmp.ne.s32.totalorder %s75, %s76
      %p87 = scmp.eq.s32.totalorder %s18, 0
      %p88 = por %p86, %p87
      %p89 = scmp.ne.s32.totalorder %s75, %s76
      %p90 = scmp.eq.s32.totalorder %s19, 48
      %p91 = por %p89, %p90
      %p93 = scmp.ne.s32.totalorder %s76, %s92
      %p94 = scmp.eq.s32.totalorder %s19, 0
      %p95 = por %p93, %p94
      %s96 = ssub.s32 %s20, %s39
      %s97 = ssub.s32 %s22, %s31
      %s98 = sor.u32 %s96, %s97
      %p99 = scmp.eq.s32.totalorder %s98, 0
      %s101 = sadd.s32 %s100, 1
      %s102 = scalar_select %p99, %s100, %s101
      %p105 = pneg %p99
      %p106 = scmp.eq.s32.totalorder %s13, 48
      %p107 = por %p105, %p106
      %p108 = scmp.ne.s32.totalorder %s100, %s103
      %p109 = scmp.eq.s32.totalorder %s13, 0
      %p110 = por %p108, %p109
      %p111 = scmp.ne.s32.totalorder %s100, %s103
      %p112 = scmp.eq.s32.totalorder %s18, 48
      %p113 = por %p111, %p112
      %p114 = scmp.ne.s32.totalorder %s103, %s104
      %p115 = scmp.eq.s32.totalorder %s18, 0
      %p116 = por %p114, %p115
      %p117 = scmp.ne.s32.totalorder %s103, %s104
      %p118 = scmp.eq.s32.totalorder %s19, 48
      %p119 = por %p117, %p118
      %p121 = scmp.ne.s32.totalorder %s104, %s120
      %p122 = scmp.eq.s32.totalorder %s19, 0
      %p123 = por %p121, %p122
      %s124 = ssub.s32 %s20, %s39
      %s125 = ssub.s32 %s22, %s31
      %s126 = sor.u32 %s124, %s125
      %p127 = scmp.eq.s32.totalorder %s126, 0
      %s129 = sadd.s32 %s128, 1
      %s130 = scalar_select %p127, %s128, %s129
      %p133 = pneg %p127
      %p134 = scmp.eq.s32.totalorder %s13, 48
      %p135 = por %p133, %p134
      %p136 = scmp.ne.s32.totalorder %s128, %s131
      %p137 = scmp.eq.s32.totalorder %s13, 0
      %p138 = por %p136, %p137
      %p139 = scmp.ne.s32.totalorder %s128, %s131
      %p140 = scmp.eq.s32.totalorder %s18, 48
      %p141 = por %p139, %p140
      %p142 = scmp.ne.s32.totalorder %s131, %s132
      %p143 = scmp.eq.s32.totalorder %s18, 0
      %p144 = por %p142, %p143
      %p145 = scmp.ne.s32.totalorder %s131, %s132
      %p146 = scmp.eq.s32.totalorder %s19, 48
      %p147 = por %p145, %p146
      %p149 = scmp.ne.s32.totalorder %s132, %s148
      %p150 = scmp.eq.s32.totalorder %s19, 0
      %p151 = por %p149, %p150
      %s152 = ssub.s32 %s20, %s39
      %s153 = ssub.s32 %s21, %s35
      %s154 = sor.u32 %s152, %s153
      %s155 = ssub.s32 %s22, %s31
      %s156 = sor.u32 %s154, %s155
      %p157 = scmp.eq.s32.totalorder %s156, 0
      %s159 = sadd.s32 %s158, 1
      %s160 = scalar_select %p157, %s158, %s159
      %p163 = pneg %p157
      %p164 = scmp.eq.s32.totalorder %s13, 48
      %p165 = por %p163, %p164
      %p166 = scmp.ne.s32.totalorder %s158, %s161
      %p167 = scmp.eq.s32.totalorder %s13, 0
      %p168 = por %p166, %p167
      %p169 = scmp.ne.s32.totalorder %s158, %s161
      %p170 = scmp.eq.s32.totalorder %s18, 48
      %p171 = por %p169, %p170
      %p172 = scmp.ne.s32.totalorder %s161, %s162
      %p173 = scmp.eq.s32.totalorder %s18, 0
      %p174 = por %p172, %p173
      %p175 = scmp.ne.s32.totalorder %s161, %s162
      %p176 = scmp.eq.s32.totalorder %s19, 48
      %p177 = por %p175, %p176
      %p179 = scmp.ne.s32.totalorder %s162, %s178
      %p180 = scmp.eq.s32.totalorder %s19, 0
      %p181 = por %p179, %p180
      %p182 = scmp.le.s32.totalorder 1, %s13
      %p183 = scmp.lt.s32.totalorder %s13, 50
      %p184 = pnand %p182, %p183
      %p185 = pneg %p184
      // Predicated region
      $region9: #{tpu_custom_call.1} parent=5 // pred_check
        _
      $region10: #{tpu_custom_call.1} parent=5 // pred_check_branch
        %187 = sbr.rel (%p184) target = $region12
      $region11: #{tpu_custom_call.1} parent=5 // pred_region
        %s188 = ssub.s32 %s13, 1
        // Predicated region
        $region13: #{tpu_custom_call.1} parent=11 // pred_check
          %p189 = pneg %p88
        $region14: #{tpu_custom_call.1} parent=11 // pred_check_branch
          %191 = sbr.rel (%p189) target = $region16
        $region15: #{tpu_custom_call.1} parent=11 // pred_region
          %p192 = scmp.lt.s32.totalorder %s23, 0
          %s193 = scalar_select %p192, %s23, 0
          %p194 = scmp.lt.s32.totalorder %s25, 0
          %s195 = scalar_select %p194, %s25, 0
          %s196 = smul.addr %s193, 19
          %s197 = sadd.s32 %s195, %s196
          %s198 = smul.addr %s197, 4
          %s199 = scalar_lea.vmem %s1, %s198
        $region16: #{tpu_custom_call.1} parent=11 // pred_fallthru
          _
        // Predicated region
        $region17: #{tpu_custom_call.1} parent=11 // pred_check
          %p200 = pneg %p116
        $region18: #{tpu_custom_call.1} parent=11 // pred_check_branch
          %202 = sbr.rel (%p200) target = $region20
        $region19: #{tpu_custom_call.1} parent=11 // pred_region
          %p203 = scmp.lt.s32.totalorder %s23, 0
          %s204 = scalar_select %p203, %s23, 0
          %p205 = scmp.lt.s32.totalorder %s25, 0
          %s206 = scalar_select %p205, %s25, 0
          %s207 = sadd.s32 %s206, %s204
          %s208 = scalar_lea.vmem %s2, %s207
        $region20: #{tpu_custom_call.1} parent=11 // pred_fallthru
          _
        // Predicated region
        $region21: #{tpu_custom_call.1} parent=11 // pred_check
          %p209 = pneg %p144
        $region22: #{tpu_custom_call.1} parent=11 // pred_check_branch
          %211 = sbr.rel (%p209) target = $region24
        $region23: #{tpu_custom_call.1} parent=11 // pred_region
          %p212 = scmp.lt.s32.totalorder %s23, 0
          %s213 = scalar_select %p212, %s23, 0
          %p214 = scmp.lt.s32.totalorder %s25, 0
          %s215 = scalar_select %p214, %s25, 0
          %s216 = sadd.s32 %s215, %s213
          %s217 = scalar_lea.vmem %s3, %s216
        $region24: #{tpu_custom_call.1} parent=11 // pred_fallthru
          _
      $region12: #{tpu_custom_call.1} parent=5 // pred_fallthru
        _
      %p218 = scmp.lt.s32.totalorder %s13, 49
      // Predicated region
      $region25: #{tpu_custom_call.1} parent=5 // pred_check
        %p219 = pneg %p218
      $region26: #{tpu_custom_call.1} parent=5 // pred_check_branch
        %221 = sbr.rel (%p219) target = $region28
      $region27: #{tpu_custom_call.1} parent=5 // pred_region
        // Predicated region
        $region29: #{tpu_custom_call.1} parent=27 // pred_check
          %p222 = pneg %p54
        $region30: #{tpu_custom_call.1} parent=27 // pred_check_branch
          %224 = sbr.rel (%p222) target = $region32
        $region31: #{tpu_custom_call.1} parent=27 // pred_region
          %s225 = smul.u32 64, %s21
          %p226 = scmp.lt.s32.totalorder %s20, 0
          %s227 = scalar_select %p226, %s20, 0
          %p228 = scmp.lt.s32.totalorder %s225, 3135
          %s229 = scalar_select %p228, %s225, 3135
          %s230 = smul.addr %s229, 2
          %s231 = smul.addr %s227, 6272
          %s232 = sadd.s32 %s230, %s231
          %s233 = smul.addr %s232, 4
          %s234 = scalar_lea.vmem %s0, %s233
          %s235 = smul.u32 64, %s21
        $region32: #{tpu_custom_call.1} parent=27 // pred_fallthru
          _
      $region28: #{tpu_custom_call.1} parent=5 // pred_fallthru
        _
      %p236 = scmp.le.s32.totalorder 1, %s13
      %p237 = scmp.lt.s32.totalorder %s13, 50
      %p238 = pnand %p236, %p237
      %p239 = pneg %p238
      // Predicated region
      $region33: #{tpu_custom_call.1} parent=5 // pred_check
        _
      $region34: #{tpu_custom_call.1} parent=5 // pred_check_branch
        %241 = sbr.rel (%p238) target = $region36
      $region35: #{tpu_custom_call.1} parent=5 // pred_region
        %s242 = ssub.s32 %s13, 1
        %s243 = smul.u32 64, %s24
        %p244 = scmp.lt.s32.totalorder %s23, 0
        %s245 = scalar_select %p244, %s23, 0
        %p246 = scmp.lt.s32.totalorder %s243, 3135
        %s247 = scalar_select %p246, %s243, 3135
        %s248 = smul.addr %s247, 2
        %s249 = smul.addr %s245, 6272
        %s250 = sadd.s32 %s248, %s249
        %s251 = smul.addr %s250, 4
        %s252 = scalar_lea.vmem %s0, %s251
        %p253 = pneg %p60
        %p254 = pneg %p57
        %p255 = scmp.lt.s32.totalorder %s23, 0
        %s256 = scalar_select %p255, %s23, 0
        %p257 = scmp.lt.s32.totalorder %s25, 0
        %s258 = scalar_select %p257, %s25, 0
        %s259 = smul.addr %s256, 19
        %s260 = sadd.s32 %s258, %s259
        %s261 = smul.addr %s260, 4
        %s262 = scalar_lea.vmem %s1, %s261
        %p263 = pneg %p88
        %p264 = pneg %p85
        %p265 = scmp.lt.s32.totalorder %s23, 0
        %s266 = scalar_select %p265, %s23, 0
        %p267 = scmp.lt.s32.totalorder %s25, 0
        %s268 = scalar_select %p267, %s25, 0
        %s269 = sadd.s32 %s268, %s266
        %s270 = scalar_lea.vmem %s2, %s269
        %p271 = pneg %p116
        %p272 = pneg %p113
        %p273 = scmp.lt.s32.totalorder %s23, 0
        %s274 = scalar_select %p273, %s23, 0
        %p275 = scmp.lt.s32.totalorder %s25, 0
        %s276 = scalar_select %p275, %s25, 0
        %s277 = sadd.s32 %s276, %s274
        %s278 = scalar_lea.vmem %s3, %s277
        %p279 = pneg %p144
        %p280 = pneg %p141
        %p281 = pneg %p174
        %p282 = pneg %p171
        %s283 = sand.u32 %s161, 1
        %s284 = scalar_lea.sflag [#allocation3], %s283
        %s285 = sand.u32 %s161, 1
        %s286 = smul.addr %s285, 256
        %s287 = scalar_lea.vmem [#allocation2], %s286
        %s288 = smul.u32 64, %s24
        %p289 = scmp.lt.s32.totalorder %s23, 0
        %s290 = scalar_select %p289, %s23, 0
        %p291 = scmp.lt.s32.totalorder %s288, 3135
        %s292 = scalar_select %p291, %s288, 3135
        %s293 = smul.addr %s292, 2
        %s294 = smul.addr %s290, 6272
        %s295 = sadd.s32 %s293, %s294
        %s296 = smul.addr %s295, 4
        %s297 = scalar_lea.vmem %s0, %s296
        %s298 = smul.u32 64, %s24
        %p299 = scmp.lt.s32.totalorder %s23, 0
        %s300 = scalar_select %p299, %s23, 0
        %p301 = scmp.lt.s32.totalorder %s25, 0
        %s302 = scalar_select %p301, %s25, 0
        %s303 = smul.addr %s300, 19
        %s304 = sadd.s32 %s302, %s303
        %s305 = smul.addr %s304, 4
        %s306 = scalar_lea.vmem %s1, %s305
        %p307 = scmp.lt.s32.totalorder %s23, 0
        %s308 = scalar_select %p307, %s23, 0
        %p309 = scmp.lt.s32.totalorder %s25, 0
        %s310 = scalar_select %p309, %s25, 0
        %s311 = sadd.s32 %s310, %s308
        %s312 = scalar_lea.vmem %s2, %s311
        %p313 = scmp.lt.s32.totalorder %s23, 0
        %s314 = scalar_select %p313, %s23, 0
        %p315 = scmp.lt.s32.totalorder %s25, 0
        %s316 = scalar_select %p315, %s25, 0
        %s317 = sadd.s32 %s316, %s314
        %s318 = scalar_lea.vmem %s3, %s317
        %s319 = smul.u32 64, %s24
        %v321 = vld [vmem:[%s297] sm:$0xff]
        %v322 = vld [vmem:[%s297 + $0x8] sm:$0xff]
        %v323 = vld [vmem:[%s297 + $0x10] sm:$0xff]
        %v324 = vld [vmem:[%s297 + $0x18] sm:$0xff]
        %v325 = vld [vmem:[%s297 + $0x20] sm:$0xff]
        %v326 = vld [vmem:[%s297 + $0x28] sm:$0xff]
        %v327 = vld [vmem:[%s297 + $0x30] sm:$0xff]
        %v328 = vld [vmem:[%s297 + $0x38] sm:$0xff]
        %v329 = vld [vmem:[%s297 + $0x40] sm:$0xff]
        %v330 = vld [vmem:[%s297 + $0x48] sm:$0xff]
        %v331 = vld [vmem:[%s297 + $0x50] sm:$0xff]
        %v332 = vld [vmem:[%s297 + $0x58] sm:$0xff]
        %v333 = vld [vmem:[%s297 + $0x60] sm:$0xff]
        %v334 = vld [vmem:[%s297 + $0x68] sm:$0xff]
        %v335 = vld [vmem:[%s297 + $0x70] sm:$0xff]
        %v336 = vld [vmem:[%s297 + $0x78] sm:$0xff]
        %v337 = vld [vmem:[%s297 + $0x80] sm:$0xff]
        %v338 = vld [vmem:[%s297 + $0x88] sm:$0xff]
        %v339 = vld [vmem:[%s297 + $0x90] sm:$0xff]
        %v340 = vld [vmem:[%s297 + $0x98] sm:$0xff]
        %v341 = vld [vmem:[%s297 + $0xa0] sm:$0xff]
        %v342 = vld [vmem:[%s297 + $0xa8] sm:$0xff]
        %v343 = vld [vmem:[%s297 + $0xb0] sm:$0xff]
        %v344 = vld [vmem:[%s297 + $0xb8] sm:$0xff]
        %v345 = vld [vmem:[%s297 + $0xc0] sm:$0xff]
        %v346 = vld [vmem:[%s297 + $0xc8] sm:$0xff]
        %v347 = vld [vmem:[%s297 + $0xd0] sm:$0xff]
        %v348 = vld [vmem:[%s297 + $0xd8] sm:$0xff]
        %v349 = vld [vmem:[%s297 + $0xe0] sm:$0xff]
        %v350 = vld [vmem:[%s297 + $0xe8] sm:$0xff]
        %v351 = vld [vmem:[%s297 + $0xf0] sm:$0xff]
        %v352 = vld [vmem:[%s297 + $0xf8] sm:$0xff]
        %v353 = vld [vmem:[%s297 + $0x100] sm:$0xff]
        %v354 = vld [vmem:[%s297 + $0x108] sm:$0xff]
        %v355 = vld [vmem:[%s297 + $0x110] sm:$0xff]
        %v356 = vld [vmem:[%s297 + $0x118] sm:$0xff]
        %v357 = vld [vmem:[%s297 + $0x120] sm:$0xff]
        %v358 = vld [vmem:[%s297 + $0x128] sm:$0xff]
        %v359 = vld [vmem:[%s297 + $0x130] sm:$0xff]
        %v360 = vld [vmem:[%s297 + $0x138] sm:$0xff]
        %v361 = vld [vmem:[%s297 + $0x140] sm:$0xff]
        %v362 = vld [vmem:[%s297 + $0x148] sm:$0xff]
        %v363 = vld [vmem:[%s297 + $0x150] sm:$0xff]
        %v364 = vld [vmem:[%s297 + $0x158] sm:$0xff]
        %v365 = vld [vmem:[%s297 + $0x160] sm:$0xff]
        %v366 = vld [vmem:[%s297 + $0x168] sm:$0xff]
        %v367 = vld [vmem:[%s297 + $0x170] sm:$0xff]
        %v368 = vld [vmem:[%s297 + $0x178] sm:$0xff]
        %v369 = vld [vmem:[%s297 + $0x180] sm:$0xff]
        %v370 = vld [vmem:[%s297 + $0x188] sm:$0xff]
        %v371 = vld [vmem:[%s297 + $0x190] sm:$0xff]
        %v372 = vld [vmem:[%s297 + $0x198] sm:$0xff]
        %v373 = vld [vmem:[%s297 + $0x1a0] sm:$0xff]
        %v374 = vld [vmem:[%s297 + $0x1a8] sm:$0xff]
        %v375 = vld [vmem:[%s297 + $0x1b0] sm:$0xff]
        %v376 = vld [vmem:[%s297 + $0x1b8] sm:$0xff]
        %v377 = vld [vmem:[%s297 + $0x1c0] sm:$0xff]
        %v378 = vld [vmem:[%s297 + $0x1c8] sm:$0xff]
        %v379 = vld [vmem:[%s297 + $0x1d0] sm:$0xff]
        %v380 = vld [vmem:[%s297 + $0x1d8] sm:$0xff]
        %v381 = vld [vmem:[%s297 + $0x1e0] sm:$0xff]
        %v382 = vld [vmem:[%s297 + $0x1e8] sm:$0xff]
        %v383 = vld [vmem:[%s297 + $0x1f0] sm:$0xff]
        %v384 = vld [vmem:[%s297 + $0x1f8] sm:$0xff]
        %v385 = vld [vmem:[%s306] sm:$0xf]
        %v386 = vld [vmem:[%s306 + $0x4] sm:$0xf]
        %v387 = vld [vmem:[%s306 + $0x8] sm:$0xf]
        %v388 = vld [vmem:[%s306 + $0xc] sm:$0xf]
        %v389 = vld [vmem:[%s306 + $0x10] sm:$0xf]
        %v390 = vld [vmem:[%s306 + $0x14] sm:$0xf]
        %v391 = vld [vmem:[%s306 + $0x18] sm:$0xf]
        %v392 = vld [vmem:[%s306 + $0x1c] sm:$0xf]
        %v393 = vld [vmem:[%s306 + $0x20] sm:$0xf]
        %v394 = vld [vmem:[%s306 + $0x24] sm:$0xf]
        %v395 = vld [vmem:[%s306 + $0x28] sm:$0xf]
        %v396 = vld [vmem:[%s306 + $0x2c] sm:$0xf]
        %v397 = vld [vmem:[%s306 + $0x30] sm:$0xf]
        %v398 = vld [vmem:[%s306 + $0x34] sm:$0xf]
        %v399 = vld [vmem:[%s306 + $0x38] sm:$0xf]
        %v400 = vld [vmem:[%s306 + $0x3c] sm:$0xf]
        %v401 = vld [vmem:[%s306 + $0x40] sm:$0xf]
        %v402 = vld [vmem:[%s306 + $0x44] sm:$0xf]
        %v403 = vld [vmem:[%s306 + $0x48] sm:$0x3]
        %v468 = vunpack.c.l.b16 %v321
        %v469 = vunpack.c.h.b16 %v321
        %v470 = vunpack.c.l.b16 %v322
        %v471 = vunpack.c.h.b16 %v322
        %v472 = vunpack.c.l.b16 %v323
        %v473 = vunpack.c.h.b16 %v323
        %v474 = vunpack.c.l.b16 %v324
        %v475 = vunpack.c.h.b16 %v324
        %v476 = vunpack.c.l.b16 %v325
        %v477 = vunpack.c.h.b16 %v325
        %v478 = vunpack.c.l.b16 %v326
        %v479 = vunpack.c.h.b16 %v326
        %v480 = vunpack.c.l.b16 %v327
        %v481 = vunpack.c.h.b16 %v327
        %v482 = vunpack.c.l.b16 %v328
        %v483 = vunpack.c.h.b16 %v328
        %v484 = vunpack.c.l.b16 %v329
        %v485 = vunpack.c.h.b16 %v329
        %v486 = vunpack.c.l.b16 %v330
        %v487 = vunpack.c.h.b16 %v330
        %v488 = vunpack.c.l.b16 %v331
        %v489 = vunpack.c.h.b16 %v331
        %v490 = vunpack.c.l.b16 %v332
        %v491 = vunpack.c.h.b16 %v332
        %v492 = vunpack.c.l.b16 %v333
        %v493 = vunpack.c.h.b16 %v333
        %v494 = vunpack.c.l.b16 %v334
        %v495 = vunpack.c.h.b16 %v334
        %v496 = vunpack.c.l.b16 %v335
        %v497 = vunpack.c.h.b16 %v335
        %v498 = vunpack.c.l.b16 %v336
        %v499 = vunpack.c.h.b16 %v336
        %v500 = vunpack.c.l.b16 %v337
        %v501 = vunpack.c.h.b16 %v337
        %v502 = vunpack.c.l.b16 %v338
        %v503 = vunpack.c.h.b16 %v338
        %v504 = vunpack.c.l.b16 %v339
        %v505 = vunpack.c.h.b16 %v339
        %v506 = vunpack.c.l.b16 %v340
        %v507 = vunpack.c.h.b16 %v340
        %v508 = vunpack.c.l.b16 %v341
        %v509 = vunpack.c.h.b16 %v341
        %v510 = vunpack.c.l.b16 %v342
        %v511 = vunpack.c.h.b16 %v342
        %v512 = vunpack.c.l.b16 %v343
        %v513 = vunpack.c.h.b16 %v343
        %v514 = vunpack.c.l.b16 %v344
        %v515 = vunpack.c.h.b16 %v344
        %v516 = vunpack.c.l.b16 %v345
        %v517 = vunpack.c.h.b16 %v345
        %v518 = vunpack.c.l.b16 %v346
        %v519 = vunpack.c.h.b16 %v346
        %v520 = vunpack.c.l.b16 %v347
        %v521 = vunpack.c.h.b16 %v347
        %v522 = vunpack.c.l.b16 %v348
        %v523 = vunpack.c.h.b16 %v348
        %v524 = vunpack.c.l.b16 %v349
        %v525 = vunpack.c.h.b16 %v349
        %v526 = vunpack.c.l.b16 %v350
        %v527 = vunpack.c.h.b16 %v350
        %v528 = vunpack.c.l.b16 %v351
        %v529 = vunpack.c.h.b16 %v351
        %v530 = vunpack.c.l.b16 %v352
        %v531 = vunpack.c.h.b16 %v352
        %v532 = vunpack.c.l.b16 %v353
        %v533 = vunpack.c.h.b16 %v353
        %v534 = vunpack.c.l.b16 %v354
        %v535 = vunpack.c.h.b16 %v354
        %v536 = vunpack.c.l.b16 %v355
        %v537 = vunpack.c.h.b16 %v355
        %v538 = vunpack.c.l.b16 %v356
        %v539 = vunpack.c.h.b16 %v356
        %v540 = vunpack.c.l.b16 %v357
        %v541 = vunpack.c.h.b16 %v357
        %v542 = vunpack.c.l.b16 %v358
        %v543 = vunpack.c.h.b16 %v358
        %v544 = vunpack.c.l.b16 %v359
        %v545 = vunpack.c.h.b16 %v359
        %v546 = vunpack.c.l.b16 %v360
        %v547 = vunpack.c.h.b16 %v360
        %v548 = vunpack.c.l.b16 %v361
        %v549 = vunpack.c.h.b16 %v361
        %v550 = vunpack.c.l.b16 %v362
        %v551 = vunpack.c.h.b16 %v362
        %v552 = vunpack.c.l.b16 %v363
        %v553 = vunpack.c.h.b16 %v363
        %v554 = vunpack.c.l.b16 %v364
        %v555 = vunpack.c.h.b16 %v364
        %v556 = vunpack.c.l.b16 %v365
        %v557 = vunpack.c.h.b16 %v365
        %v558 = vunpack.c.l.b16 %v366
        %v559 = vunpack.c.h.b16 %v366
        %v560 = vunpack.c.l.b16 %v367
        %v561 = vunpack.c.h.b16 %v367
        %v562 = vunpack.c.l.b16 %v368
        %v563 = vunpack.c.h.b16 %v368
        %v564 = vunpack.c.l.b16 %v369
        %v565 = vunpack.c.h.b16 %v369
        %v566 = vunpack.c.l.b16 %v370
        %v567 = vunpack.c.h.b16 %v370
        %v568 = vunpack.c.l.b16 %v371
        %v569 = vunpack.c.h.b16 %v371
        %v570 = vunpack.c.l.b16 %v372
        %v571 = vunpack.c.h.b16 %v372
        %v572 = vunpack.c.l.b16 %v373
        %v573 = vunpack.c.h.b16 %v373
        %v574 = vunpack.c.l.b16 %v374
        %v575 = vunpack.c.h.b16 %v374
        %v576 = vunpack.c.l.b16 %v375
        %v577 = vunpack.c.h.b16 %v375
        %v578 = vunpack.c.l.b16 %v376
        %v579 = vunpack.c.h.b16 %v376
        %v580 = vunpack.c.l.b16 %v377
        %v581 = vunpack.c.h.b16 %v377
        %v582 = vunpack.c.l.b16 %v378
        %v583 = vunpack.c.h.b16 %v378
        %v584 = vunpack.c.l.b16 %v379
        %v585 = vunpack.c.h.b16 %v379
        %v586 = vunpack.c.l.b16 %v380
        %v587 = vunpack.c.h.b16 %v380
        %v588 = vunpack.c.l.b16 %v381
        %v589 = vunpack.c.h.b16 %v381
        %v590 = vunpack.c.l.b16 %v382
        %v591 = vunpack.c.h.b16 %v382
        %v592 = vunpack.c.l.b16 %v383
        %v593 = vunpack.c.h.b16 %v383
        %v594 = vunpack.c.l.b16 %v384
        %v595 = vunpack.c.h.b16 %v384
        %v596 = vpack.c.b16 %v470, %v468
        %v597 = vpack.c.b16 %v471, %v469
        %v598 = vpack.c.b16 %v474, %v472
        %v599 = vpack.c.b16 %v475, %v473
        %v600 = vpack.c.b16 %v478, %v476
        %v601 = vpack.c.b16 %v479, %v477
        %v602 = vpack.c.b16 %v482, %v480
        %v603 = vpack.c.b16 %v483, %v481
        %v604 = vpack.c.b16 %v486, %v484
        %v605 = vpack.c.b16 %v487, %v485
        %v606 = vpack.c.b16 %v490, %v488
        %v607 = vpack.c.b16 %v491, %v489
        %v608 = vpack.c.b16 %v494, %v492
        %v609 = vpack.c.b16 %v495, %v493
        %v610 = vpack.c.b16 %v498, %v496
        %v611 = vpack.c.b16 %v499, %v497
        %v612 = vpack.c.b16 %v502, %v500
        %v613 = vpack.c.b16 %v503, %v501
        %v614 = vpack.c.b16 %v506, %v504
        %v615 = vpack.c.b16 %v507, %v505
        %v616 = vpack.c.b16 %v510, %v508
        %v617 = vpack.c.b16 %v511, %v509
        %v618 = vpack.c.b16 %v514, %v512
        %v619 = vpack.c.b16 %v515, %v513
        %v620 = vpack.c.b16 %v518, %v516
        %v621 = vpack.c.b16 %v519, %v517
        %v622 = vpack.c.b16 %v522, %v520
        %v623 = vpack.c.b16 %v523, %v521
        %v624 = vpack.c.b16 %v526, %v524
        %v625 = vpack.c.b16 %v527, %v525
        %v626 = vpack.c.b16 %v530, %v528
        %v627 = vpack.c.b16 %v531, %v529
        %v628 = vpack.c.b16 %v534, %v532
        %v629 = vpack.c.b16 %v535, %v533
        %v630 = vpack.c.b16 %v538, %v536
        %v631 = vpack.c.b16 %v539, %v537
        %v632 = vpack.c.b16 %v542, %v540
        %v633 = vpack.c.b16 %v543, %v541
        %v634 = vpack.c.b16 %v546, %v544
        %v635 = vpack.c.b16 %v547, %v545
        %v636 = vpack.c.b16 %v550, %v548
        %v637 = vpack.c.b16 %v551, %v549
        %v638 = vpack.c.b16 %v554, %v552
        %v639 = vpack.c.b16 %v555, %v553
        %v640 = vpack.c.b16 %v558, %v556
        %v641 = vpack.c.b16 %v559, %v557
        %v642 = vpack.c.b16 %v562, %v560
        %v643 = vpack.c.b16 %v563, %v561
        %v644 = vpack.c.b16 %v566, %v564
        %v645 = vpack.c.b16 %v567, %v565
        %v646 = vpack.c.b16 %v570, %v568
        %v647 = vpack.c.b16 %v571, %v569
        %v648 = vpack.c.b16 %v574, %v572
        %v649 = vpack.c.b16 %v575, %v573
        %v650 = vpack.c.b16 %v578, %v576
        %v651 = vpack.c.b16 %v579, %v577
        %v652 = vpack.c.b16 %v582, %v580
        %v653 = vpack.c.b16 %v583, %v581
        %v654 = vpack.c.b16 %v586, %v584
        %v655 = vpack.c.b16 %v587, %v585
        %v656 = vpack.c.b16 %v590, %v588
        %v657 = vpack.c.b16 %v591, %v589
        %v658 = vpack.c.b16 %v594, %v592
        %v659 = vpack.c.b16 %v595, %v593
        %v711 = vunpack.c.l.b16 %v385
        %v712 = vunpack.c.l.b16 %v386
        %v713 = vunpack.c.l.b16 %v387
        %v714 = vunpack.c.l.b16 %v388
        %v715 = vunpack.c.l.b16 %v389
        %v716 = vunpack.c.l.b16 %v390
        %v717 = vunpack.c.l.b16 %v391
        %v718 = vunpack.c.l.b16 %v392
        %v719 = vunpack.c.l.b16 %v393
        %v720 = vunpack.c.l.b16 %v394
        %v721 = vunpack.c.l.b16 %v395
        %v722 = vunpack.c.l.b16 %v396
        %v723 = vunpack.c.l.b16 %v397
        %v724 = vunpack.c.l.b16 %v398
        %v725 = vunpack.c.l.b16 %v399
        %v726 = vunpack.c.l.b16 %v400
        %v727 = vunpack.c.l.b16 %v401
        %v728 = vunpack.c.l.b16 %v402
        %v729 = vunpack.c.l.b16 %v403
        %v730 = vpack.c.b16 %v712, %v711
        %v731 = vpack.c.b16 %v714, %v713
        %v732 = vpack.c.b16 %v716, %v715
        %v733 = vpack.c.b16 %v718, %v717
        %v734 = vpack.c.b16 %v720, %v719
        %v735 = vpack.c.b16 %v722, %v721
        %v736 = vpack.c.b16 %v724, %v723
        %v737 = vpack.c.b16 %v726, %v725
        %v738 = vpack.c.b16 %v728, %v727
        %v739 = vpack.c.b16 %v729, %v729
        %vm749 = vcmask 154624
        %v751 = vsel %vm749, %v597, 0
        %v754 = vsel %vm749, %v599, 0
        %v757 = vsel %vm749, %v601, 0
        %v760 = vsel %vm749, %v603, 0
        %v763 = vsel %vm749, %v605, 0
        %v766 = vsel %vm749, %v607, 0
        %v769 = vsel %vm749, %v609, 0
        %v772 = vsel %vm749, %v611, 0
        %v775 = vsel %vm749, %v613, 0
        %v778 = vsel %vm749, %v615, 0
        %v781 = vsel %vm749, %v617, 0
        %v784 = vsel %vm749, %v619, 0
        %v787 = vsel %vm749, %v621, 0
        %v790 = vsel %vm749, %v623, 0
        %v793 = vsel %vm749, %v625, 0
        %v796 = vsel %vm749, %v627, 0
        %v799 = vsel %vm749, %v629, 0
        %v802 = vsel %vm749, %v631, 0
        %v805 = vsel %vm749, %v633, 0
        %v808 = vsel %vm749, %v635, 0
        %v811 = vsel %vm749, %v637, 0
        %v814 = vsel %vm749, %v639, 0
        %v817 = vsel %vm749, %v641, 0
        %v820 = vsel %vm749, %v643, 0
        %v823 = vsel %vm749, %v645, 0
        %v826 = vsel %vm749, %v647, 0
        %v829 = vsel %vm749, %v649, 0
        %v832 = vsel %vm749, %v651, 0
        %v835 = vsel %vm749, %v653, 0
        %v838 = vsel %vm749, %v655, 0
        %v841 = vsel %vm749, %v657, 0
        %v844 = vsel %vm749, %v659, 0
        %vm846 = vcmask 1040384
        %vm847 = vcmask 1041408
        %v848 = vsel %vm846, 4294967295, 65535
        %v849 = vsel %vm847, %v848, 0
        %v851 = vand.u32 %v739, %v849
        %853 = vmatpush.bf16.msra.mxu0 %v737
        %854 = vmatpush.bf16.msra.mxu0 %v736
        %855 = vmatpush.bf16.msra.mxu0 %v735
        %856 = vmatpush.bf16.msra.mxu0 %v734
        %857 = vmatpush.bf16.msra.mxu0 %v733
        %858 = vmatpush.bf16.msra.mxu0 %v732
        %859 = vmatpush.bf16.msra.mxu0 %v731
        %860 = vmatpush.bf16.msra.mxu0 %v730
        %861 = vmatmul.bf16.gmra.mxu0 %v596
        %v862 = vpop.f32.mrf.mxu0
        %v863 = vadd.f32 0.0, %v862
        %v864 = vpop.f32.mrf.mxu0
        %v865 = vadd.f32 0.0, %v864
        %866 = vmatmul.bf16.gmra.mxu0 %v598
        %v867 = vpop.f32.mrf.mxu0
        %v868 = vadd.f32 0.0, %v867
        %v869 = vpop.f32.mrf.mxu0
        %v870 = vadd.f32 0.0, %v869
        %871 = vmatmul.bf16.gmra.mxu0 %v600
        %v872 = vpop.f32.mrf.mxu0
        %v873 = vadd.f32 0.0, %v872
        %v874 = vpop.f32.mrf.mxu0
        %v875 = vadd.f32 0.0, %v874
        %876 = vmatmul.bf16.gmra.mxu0 %v602
        %v877 = vpop.f32.mrf.mxu0
        %v878 = vadd.f32 0.0, %v877
        %v879 = vpop.f32.mrf.mxu0
        %v880 = vadd.f32 0.0, %v879
        %881 = vmatmul.bf16.gmra.mxu0 %v604
        %v882 = vpop.f32.mrf.mxu0
        %v883 = vadd.f32 0.0, %v882
        %v884 = vpop.f32.mrf.mxu0
        %v885 = vadd.f32 0.0, %v884
        %886 = vmatmul.bf16.gmra.mxu0 %v606
        %v887 = vpop.f32.mrf.mxu0
        %v888 = vadd.f32 0.0, %v887
        %v889 = vpop.f32.mrf.mxu0
        %v890 = vadd.f32 0.0, %v889
        %891 = vmatmul.bf16.gmra.mxu0 %v608
        %v892 = vpop.f32.mrf.mxu0
        %v893 = vadd.f32 0.0, %v892
        %v894 = vpop.f32.mrf.mxu0
        %v895 = vadd.f32 0.0, %v894
        %896 = vmatmul.bf16.gmra.mxu0 %v610
        %v897 = vpop.f32.mrf.mxu0
        %v898 = vadd.f32 0.0, %v897
        %v899 = vpop.f32.mrf.mxu0
        %v900 = vadd.f32 0.0, %v899
        %901 = vmatmul.bf16.gmra.mxu0 %v612
        %v902 = vpop.f32.mrf.mxu0
        %v903 = vadd.f32 0.0, %v902
        %v904 = vpop.f32.mrf.mxu0
        %v905 = vadd.f32 0.0, %v904
        %906 = vmatmul.bf16.gmra.mxu0 %v614
        %v907 = vpop.f32.mrf.mxu0
        %v908 = vadd.f32 0.0, %v907
        %v909 = vpop.f32.mrf.mxu0
        %v910 = vadd.f32 0.0, %v909
        %911 = vmatmul.bf16.gmra.mxu0 %v616
        %v912 = vpop.f32.mrf.mxu0
        %v913 = vadd.f32 0.0, %v912
        %v914 = vpop.f32.mrf.mxu0
        %v915 = vadd.f32 0.0, %v914
        %916 = vmatmul.bf16.gmra.mxu0 %v618
        %v917 = vpop.f32.mrf.mxu0
        %v918 = vadd.f32 0.0, %v917
        %v919 = vpop.f32.mrf.mxu0
        %v920 = vadd.f32 0.0, %v919
        %921 = vmatmul.bf16.gmra.mxu0 %v620
        %v922 = vpop.f32.mrf.mxu0
        %v923 = vadd.f32 0.0, %v922
        %v924 = vpop.f32.mrf.mxu0
        %v925 = vadd.f32 0.0, %v924
        %926 = vmatmul.bf16.gmra.mxu0 %v622
        %v927 = vpop.f32.mrf.mxu0
        %v928 = vadd.f32 0.0, %v927
        %v929 = vpop.f32.mrf.mxu0
        %v930 = vadd.f32 0.0, %v929
        %931 = vmatmul.bf16.gmra.mxu0 %v624
        %v932 = vpop.f32.mrf.mxu0
        %v933 = vadd.f32 0.0, %v932
        %v934 = vpop.f32.mrf.mxu0
        %v935 = vadd.f32 0.0, %v934
        %936 = vmatmul.bf16.gmra.mxu0 %v626
        %v937 = vpop.f32.mrf.mxu0
        %v938 = vadd.f32 0.0, %v937
        %v939 = vpop.f32.mrf.mxu0
        %v940 = vadd.f32 0.0, %v939
        %941 = vmatmul.bf16.gmra.mxu0 %v628
        %v942 = vpop.f32.mrf.mxu0
        %v943 = vadd.f32 0.0, %v942
        %v944 = vpop.f32.mrf.mxu0
        %v945 = vadd.f32 0.0, %v944
        %946 = vmatmul.bf16.gmra.mxu0 %v630
        %v947 = vpop.f32.mrf.mxu0
        %v948 = vadd.f32 0.0, %v947
        %v949 = vpop.f32.mrf.mxu0
        %v950 = vadd.f32 0.0, %v949
        %951 = vmatmul.bf16.gmra.mxu0 %v632
        %v952 = vpop.f32.mrf.mxu0
        %v953 = vadd.f32 0.0, %v952
        %v954 = vpop.f32.mrf.mxu0
        %v955 = vadd.f32 0.0, %v954
        %956 = vmatmul.bf16.gmra.mxu0 %v634
        %v957 = vpop.f32.mrf.mxu0
        %v958 = vadd.f32 0.0, %v957
        %v959 = vpop.f32.mrf.mxu0
        %v960 = vadd.f32 0.0, %v959
        %961 = vmatmul.bf16.gmra.mxu0 %v636
        %v962 = vpop.f32.mrf.mxu0
        %v963 = vadd.f32 0.0, %v962
        %v964 = vpop.f32.mrf.mxu0
        %v965 = vadd.f32 0.0, %v964
        %966 = vmatmul.bf16.gmra.mxu0 %v638
        %v967 = vpop.f32.mrf.mxu0
        %v968 = vadd.f32 0.0, %v967
        %v969 = vpop.f32.mrf.mxu0
        %v970 = vadd.f32 0.0, %v969
        %971 = vmatmul.bf16.gmra.mxu0 %v640
        %v972 = vpop.f32.mrf.mxu0
        %v973 = vadd.f32 0.0, %v972
        %v974 = vpop.f32.mrf.mxu0
        %v975 = vadd.f32 0.0, %v974
        %976 = vmatmul.bf16.gmra.mxu0 %v642
        %v977 = vpop.f32.mrf.mxu0
        %v978 = vadd.f32 0.0, %v977
        %v979 = vpop.f32.mrf.mxu0
        %v980 = vadd.f32 0.0, %v979
        %981 = vmatmul.bf16.gmra.mxu0 %v644
        %v982 = vpop.f32.mrf.mxu0
        %v983 = vadd.f32 0.0, %v982
        %v984 = vpop.f32.mrf.mxu0
        %v985 = vadd.f32 0.0, %v984
        %986 = vmatmul.bf16.gmra.mxu0 %v646
        %v987 = vpop.f32.mrf.mxu0
        %v988 = vadd.f32 0.0, %v987
        %v989 = vpop.f32.mrf.mxu0
        %v990 = vadd.f32 0.0, %v989
        %991 = vmatmul.bf16.gmra.mxu0 %v648
        %v992 = vpop.f32.mrf.mxu0
        %v993 = vadd.f32 0.0, %v992
        %v994 = vpop.f32.mrf.mxu0
        %v995 = vadd.f32 0.0, %v994
        %996 = vmatmul.bf16.gmra.mxu0 %v650
        %v997 = vpop.f32.mrf.mxu0
        %v998 = vadd.f32 0.0, %v997
        %v999 = vpop.f32.mrf.mxu0
        %v1000 = vadd.f32 0.0, %v999
        %1001 = vmatmul.bf16.gmra.mxu0 %v652
        %v1002 = vpop.f32.mrf.mxu0
        %v1003 = vadd.f32 0.0, %v1002
        %v1004 = vpop.f32.mrf.mxu0
        %v1005 = vadd.f32 0.0, %v1004
        %1006 = vmatmul.bf16.gmra.mxu0 %v654
        %v1007 = vpop.f32.mrf.mxu0
        %v1008 = vadd.f32 0.0, %v1007
        %v1009 = vpop.f32.mrf.mxu0
        %v1010 = vadd.f32 0.0, %v1009
        %1011 = vmatmul.bf16.gmra.mxu0 %v656
        %v1012 = vpop.f32.mrf.mxu0
        %v1013 = vadd.f32 0.0, %v1012
        %v1014 = vpop.f32.mrf.mxu0
        %v1015 = vadd.f32 0.0, %v1014
        %1016 = vmatmul.bf16.gmra.mxu0 %v658
        %v1017 = vpop.f32.mrf.mxu0
        %v1018 = vadd.f32 0.0, %v1017
        %v1019 = vpop.f32.mrf.mxu0
        %v1020 = vadd.f32 0.0, %v1019
        %1021 = vdwg.mxu0
        %1022 = vmatpush.bf16.msra.mxu0 0
        %1023 = vmatpush.bf16.msra.mxu0 0
        %1024 = vmatpush.bf16.msra.mxu0 0
        %1025 = vmatpush.bf16.msra.mxu0 0
        %1026 = vmatpush.bf16.msra.mxu0 0
        %1027 = vmatpush.bf16.msra.mxu0 0
        %1028 = vmatpush.bf16.msra.mxu0 %v851
        %1029 = vmatpush.bf16.msra.mxu0 %v738
        %1030 = vmatmul.bf16.gmra.mxu0 %v751
        %v1031 = vpop.f32.mrf.mxu0
        %v1032 = vadd.f32 %v863, %v1031
        %v1033 = vpop.f32.mrf.mxu0
        %v1034 = vadd.f32 %v865, %v1033
        %1035 = vmatmul.bf16.gmra.mxu0 %v754
        %v1036 = vpop.f32.mrf.mxu0
        %v1037 = vadd.f32 %v868, %v1036
        %v1038 = vpop.f32.mrf.mxu0
        %v1039 = vadd.f32 %v870, %v1038
        %1040 = vmatmul.bf16.gmra.mxu0 %v757
        %v1041 = vpop.f32.mrf.mxu0
        %v1042 = vadd.f32 %v873, %v1041
        %v1043 = vpop.f32.mrf.mxu0
        %v1044 = vadd.f32 %v875, %v1043
        %1045 = vmatmul.bf16.gmra.mxu0 %v760
        %v1046 = vpop.f32.mrf.mxu0
        %v1047 = vadd.f32 %v878, %v1046
        %v1048 = vpop.f32.mrf.mxu0
        %v1049 = vadd.f32 %v880, %v1048
        %1050 = vmatmul.bf16.gmra.mxu0 %v763
        %v1051 = vpop.f32.mrf.mxu0
        %v1052 = vadd.f32 %v883, %v1051
        %v1053 = vpop.f32.mrf.mxu0
        %v1054 = vadd.f32 %v885, %v1053
        %1055 = vmatmul.bf16.gmra.mxu0 %v766
        %v1056 = vpop.f32.mrf.mxu0
        %v1057 = vadd.f32 %v888, %v1056
        %v1058 = vpop.f32.mrf.mxu0
        %v1059 = vadd.f32 %v890, %v1058
        %1060 = vmatmul.bf16.gmra.mxu0 %v769
        %v1061 = vpop.f32.mrf.mxu0
        %v1062 = vadd.f32 %v893, %v1061
        %v1063 = vpop.f32.mrf.mxu0
        %v1064 = vadd.f32 %v895, %v1063
        %1065 = vmatmul.bf16.gmra.mxu0 %v772
        %v1066 = vpop.f32.mrf.mxu0
        %v1067 = vadd.f32 %v898, %v1066
        %v1068 = vpop.f32.mrf.mxu0
        %v1069 = vadd.f32 %v900, %v1068
        %1070 = vmatmul.bf16.gmra.mxu0 %v775
        %v1071 = vpop.f32.mrf.mxu0
        %v1072 = vadd.f32 %v903, %v1071
        %v1073 = vpop.f32.mrf.mxu0
        %v1074 = vadd.f32 %v905, %v1073
        %1075 = vmatmul.bf16.gmra.mxu0 %v778
        %v1076 = vpop.f32.mrf.mxu0
        %v1077 = vadd.f32 %v908, %v1076
        %v1078 = vpop.f32.mrf.mxu0
        %v1079 = vadd.f32 %v910, %v1078
        %1080 = vmatmul.bf16.gmra.mxu0 %v781
        %v1081 = vpop.f32.mrf.mxu0
        %v1082 = vadd.f32 %v913, %v1081
        %v1083 = vpop.f32.mrf.mxu0
        %v1084 = vadd.f32 %v915, %v1083
        %1085 = vmatmul.bf16.gmra.mxu0 %v784
        %v1086 = vpop.f32.mrf.mxu0
        %v1087 = vadd.f32 %v918, %v1086
        %v1088 = vpop.f32.mrf.mxu0
        %v1089 = vadd.f32 %v920, %v1088
        %1090 = vmatmul.bf16.gmra.mxu0 %v787
        %v1091 = vpop.f32.mrf.mxu0
        %v1092 = vadd.f32 %v923, %v1091
        %v1093 = vpop.f32.mrf.mxu0
        %v1094 = vadd.f32 %v925, %v1093
        %1095 = vmatmul.bf16.gmra.mxu0 %v790
        %v1096 = vpop.f32.mrf.mxu0
        %v1097 = vadd.f32 %v928, %v1096
        %v1098 = vpop.f32.mrf.mxu0
        %v1099 = vadd.f32 %v930, %v1098
        %1100 = vmatmul.bf16.gmra.mxu0 %v793
        %v1101 = vpop.f32.mrf.mxu0
        %v1102 = vadd.f32 %v933, %v1101
        %v1103 = vpop.f32.mrf.mxu0
        %v1104 = vadd.f32 %v935, %v1103
        %1105 = vmatmul.bf16.gmra.mxu0 %v796
        %v1106 = vpop.f32.mrf.mxu0
        %v1107 = vadd.f32 %v938, %v1106
        %v1108 = vpop.f32.mrf.mxu0
        %v1109 = vadd.f32 %v940, %v1108
        %1110 = vmatmul.bf16.gmra.mxu0 %v799
        %v1111 = vpop.f32.mrf.mxu0
        %v1112 = vadd.f32 %v943, %v1111
        %v1113 = vpop.f32.mrf.mxu0
        %v1114 = vadd.f32 %v945, %v1113
        %1115 = vmatmul.bf16.gmra.mxu0 %v802
        %v1116 = vpop.f32.mrf.mxu0
        %v1117 = vadd.f32 %v948, %v1116
        %v1118 = vpop.f32.mrf.mxu0
        %v1119 = vadd.f32 %v950, %v1118
        %1120 = vmatmul.bf16.gmra.mxu0 %v805
        %v1121 = vpop.f32.mrf.mxu0
        %v1122 = vadd.f32 %v953, %v1121
        %v1123 = vpop.f32.mrf.mxu0
        %v1124 = vadd.f32 %v955, %v1123
        %1125 = vmatmul.bf16.gmra.mxu0 %v808
        %v1126 = vpop.f32.mrf.mxu0
        %v1127 = vadd.f32 %v958, %v1126
        %v1128 = vpop.f32.mrf.mxu0
        %v1129 = vadd.f32 %v960, %v1128
        %1130 = vmatmul.bf16.gmra.mxu0 %v811
        %v1131 = vpop.f32.mrf.mxu0
        %v1132 = vadd.f32 %v963, %v1131
        %v1133 = vpop.f32.mrf.mxu0
        %v1134 = vadd.f32 %v965, %v1133
        %1135 = vmatmul.bf16.gmra.mxu0 %v814
        %v1136 = vpop.f32.mrf.mxu0
        %v1137 = vadd.f32 %v968, %v1136
        %v1138 = vpop.f32.mrf.mxu0
        %v1139 = vadd.f32 %v970, %v1138
        %1140 = vmatmul.bf16.gmra.mxu0 %v817
        %v1141 = vpop.f32.mrf.mxu0
        %v1142 = vadd.f32 %v973, %v1141
        %v1143 = vpop.f32.mrf.mxu0
        %v1144 = vadd.f32 %v975, %v1143
        %1145 = vmatmul.bf16.gmra.mxu0 %v820
        %v1146 = vpop.f32.mrf.mxu0
        %v1147 = vadd.f32 %v978, %v1146
        %v1148 = vpop.f32.mrf.mxu0
        %v1149 = vadd.f32 %v980, %v1148
        %1150 = vmatmul.bf16.gmra.mxu0 %v823
        %v1151 = vpop.f32.mrf.mxu0
        %v1152 = vadd.f32 %v983, %v1151
        %v1153 = vpop.f32.mrf.mxu0
        %v1154 = vadd.f32 %v985, %v1153
        %1155 = vmatmul.bf16.gmra.mxu0 %v826
        %v1156 = vpop.f32.mrf.mxu0
        %v1157 = vadd.f32 %v988, %v1156
        %v1158 = vpop.f32.mrf.mxu0
        %v1159 = vadd.f32 %v990, %v1158
        %1160 = vmatmul.bf16.gmra.mxu0 %v829
        %v1161 = vpop.f32.mrf.mxu0
        %v1162 = vadd.f32 %v993, %v1161
        %v1163 = vpop.f32.mrf.mxu0
        %v1164 = vadd.f32 %v995, %v1163
        %1165 = vmatmul.bf16.gmra.mxu0 %v832
        %v1166 = vpop.f32.mrf.mxu0
        %v1167 = vadd.f32 %v998, %v1166
        %v1168 = vpop.f32.mrf.mxu0
        %v1169 = vadd.f32 %v1000, %v1168
        %1170 = vmatmul.bf16.gmra.mxu0 %v835
        %v1171 = vpop.f32.mrf.mxu0
        %v1172 = vadd.f32 %v1003, %v1171
        %v1173 = vpop.f32.mrf.mxu0
        %v1174 = vadd.f32 %v1005, %v1173
        %1175 = vmatmul.bf16.gmra.mxu0 %v838
        %v1176 = vpop.f32.mrf.mxu0
        %v1177 = vadd.f32 %v1008, %v1176
        %v1178 = vpop.f32.mrf.mxu0
        %v1179 = vadd.f32 %v1010, %v1178
        %1180 = vmatmul.bf16.gmra.mxu0 %v841
        %v1181 = vpop.f32.mrf.mxu0
        %v1182 = vadd.f32 %v1013, %v1181
        %v1183 = vpop.f32.mrf.mxu0
        %v1184 = vadd.f32 %v1015, %v1183
        %1185 = vmatmul.bf16.gmra.mxu0 %v844
        %v1186 = vpop.f32.mrf.mxu0
        %v1187 = vadd.f32 %v1018, %v1186
        %v1188 = vpop.f32.mrf.mxu0
        %v1189 = vadd.f32 %v1020, %v1188
        %1190 = vdwg.mxu0
        %v1191 = vld [vmem:[%s312] sm:$0x1]
        %v1193 = vperm.slane %v1191, 0
        %v1195 = vmul.f32 %v1032, %v1193
        %v1196 = vmul.f32 %v1034, %v1193
        %v1197 = vmul.f32 %v1037, %v1193
        %v1198 = vmul.f32 %v1039, %v1193
        %v1199 = vmul.f32 %v1042, %v1193
        %v1200 = vmul.f32 %v1044, %v1193
        %v1201 = vmul.f32 %v1047, %v1193
        %v1202 = vmul.f32 %v1049, %v1193
        %v1203 = vmul.f32 %v1052, %v1193
        %v1204 = vmul.f32 %v1054, %v1193
        %v1205 = vmul.f32 %v1057, %v1193
        %v1206 = vmul.f32 %v1059, %v1193
        %v1207 = vmul.f32 %v1062, %v1193
        %v1208 = vmul.f32 %v1064, %v1193
        %v1209 = vmul.f32 %v1067, %v1193
        %v1210 = vmul.f32 %v1069, %v1193
        %v1211 = vmul.f32 %v1072, %v1193
        %v1212 = vmul.f32 %v1074, %v1193
        %v1213 = vmul.f32 %v1077, %v1193
        %v1214 = vmul.f32 %v1079, %v1193
        %v1215 = vmul.f32 %v1082, %v1193
        %v1216 = vmul.f32 %v1084, %v1193
        %v1217 = vmul.f32 %v1087, %v1193
        %v1218 = vmul.f32 %v1089, %v1193
        %v1219 = vmul.f32 %v1092, %v1193
        %v1220 = vmul.f32 %v1094, %v1193
        %v1221 = vmul.f32 %v1097, %v1193
        %v1222 = vmul.f32 %v1099, %v1193
        %v1223 = vmul.f32 %v1102, %v1193
        %v1224 = vmul.f32 %v1104, %v1193
        %v1225 = vmul.f32 %v1107, %v1193
        %v1226 = vmul.f32 %v1109, %v1193
        %v1227 = vmul.f32 %v1112, %v1193
        %v1228 = vmul.f32 %v1114, %v1193
        %v1229 = vmul.f32 %v1117, %v1193
        %v1230 = vmul.f32 %v1119, %v1193
        %v1231 = vmul.f32 %v1122, %v1193
        %v1232 = vmul.f32 %v1124, %v1193
        %v1233 = vmul.f32 %v1127, %v1193
        %v1234 = vmul.f32 %v1129, %v1193
        %v1235 = vmul.f32 %v1132, %v1193
        %v1236 = vmul.f32 %v1134, %v1193
        %v1237 = vmul.f32 %v1137, %v1193
        %v1238 = vmul.f32 %v1139, %v1193
        %v1239 = vmul.f32 %v1142, %v1193
        %v1240 = vmul.f32 %v1144, %v1193
        %v1241 = vmul.f32 %v1147, %v1193
        %v1242 = vmul.f32 %v1149, %v1193
        %v1243 = vmul.f32 %v1152, %v1193
        %v1244 = vmul.f32 %v1154, %v1193
        %v1245 = vmul.f32 %v1157, %v1193
        %v1246 = vmul.f32 %v1159, %v1193
        %v1247 = vmul.f32 %v1162, %v1193
        %v1248 = vmul.f32 %v1164, %v1193
        %v1249 = vmul.f32 %v1167, %v1193
        %v1250 = vmul.f32 %v1169, %v1193
        %v1251 = vmul.f32 %v1172, %v1193
        %v1252 = vmul.f32 %v1174, %v1193
        %v1253 = vmul.f32 %v1177, %v1193
        %v1254 = vmul.f32 %v1179, %v1193
        %v1255 = vmul.f32 %v1182, %v1193
        %v1256 = vmul.f32 %v1184, %v1193
        %v1257 = vmul.f32 %v1187, %v1193
        %v1258 = vmul.f32 %v1189, %v1193
        %v1259 = vld [vmem:[%s318] sm:$0x1]
        %v1261 = vperm.slane %v1259, 0
        %v1263 = vadd.f32 %v1195, %v1261
        %v1264 = vadd.f32 %v1196, %v1261
        %v1265 = vadd.f32 %v1197, %v1261
        %v1266 = vadd.f32 %v1198, %v1261
        %v1267 = vadd.f32 %v1199, %v1261
        %v1268 = vadd.f32 %v1200, %v1261
        %v1269 = vadd.f32 %v1201, %v1261
        %v1270 = vadd.f32 %v1202, %v1261
        %v1271 = vadd.f32 %v1203, %v1261
        %v1272 = vadd.f32 %v1204, %v1261
        %v1273 = vadd.f32 %v1205, %v1261
        %v1274 = vadd.f32 %v1206, %v1261
        %v1275 = vadd.f32 %v1207, %v1261
        %v1276 = vadd.f32 %v1208, %v1261
        %v1277 = vadd.f32 %v1209, %v1261
        %v1278 = vadd.f32 %v1210, %v1261
        %v1279 = vadd.f32 %v1211, %v1261
        %v1280 = vadd.f32 %v1212, %v1261
        %v1281 = vadd.f32 %v1213, %v1261
        %v1282 = vadd.f32 %v1214, %v1261
        %v1283 = vadd.f32 %v1215, %v1261
        %v1284 = vadd.f32 %v1216, %v1261
        %v1285 = vadd.f32 %v1217, %v1261
        %v1286 = vadd.f32 %v1218, %v1261
        %v1287 = vadd.f32 %v1219, %v1261
        %v1288 = vadd.f32 %v1220, %v1261
        %v1289 = vadd.f32 %v1221, %v1261
        %v1290 = vadd.f32 %v1222, %v1261
        %v1291 = vadd.f32 %v1223, %v1261
        %v1292 = vadd.f32 %v1224, %v1261
        %v1293 = vadd.f32 %v1225, %v1261
        %v1294 = vadd.f32 %v1226, %v1261
        %v1295 = vadd.f32 %v1227, %v1261
        %v1296 = vadd.f32 %v1228, %v1261
        %v1297 = vadd.f32 %v1229, %v1261
        %v1298 = vadd.f32 %v1230, %v1261
        %v1299 = vadd.f32 %v1231, %v1261
        %v1300 = vadd.f32 %v1232, %v1261
        %v1301 = vadd.f32 %v1233, %v1261
        %v1302 = vadd.f32 %v1234, %v1261
        %v1303 = vadd.f32 %v1235, %v1261
        %v1304 = vadd.f32 %v1236, %v1261
        %v1305 = vadd.f32 %v1237, %v1261
        %v1306 = vadd.f32 %v1238, %v1261
        %v1307 = vadd.f32 %v1239, %v1261
        %v1308 = vadd.f32 %v1240, %v1261
        %v1309 = vadd.f32 %v1241, %v1261
        %v1310 = vadd.f32 %v1242, %v1261
        %v1311 = vadd.f32 %v1243, %v1261
        %v1312 = vadd.f32 %v1244, %v1261
        %v1313 = vadd.f32 %v1245, %v1261
        %v1314 = vadd.f32 %v1246, %v1261
        %v1315 = vadd.f32 %v1247, %v1261
        %v1316 = vadd.f32 %v1248, %v1261
        %v1317 = vadd.f32 %v1249, %v1261
        %v1318 = vadd.f32 %v1250, %v1261
        %v1319 = vadd.f32 %v1251, %v1261
        %v1320 = vadd.f32 %v1252, %v1261
        %v1321 = vadd.f32 %v1253, %v1261
        %v1322 = vadd.f32 %v1254, %v1261
        %v1323 = vadd.f32 %v1255, %v1261
        %v1324 = vadd.f32 %v1256, %v1261
        %v1325 = vadd.f32 %v1257, %v1261
        %v1326 = vadd.f32 %v1258, %v1261
        %v1327 = vmax.f32 %v1263, 0.0
        %v1328 = vmax.f32 %v1264, 0.0
        %v1329 = vmax.f32 %v1265, 0.0
        %v1330 = vmax.f32 %v1266, 0.0
        %v1331 = vmax.f32 %v1267, 0.0
        %v1332 = vmax.f32 %v1268, 0.0
        %v1333 = vmax.f32 %v1269, 0.0
        %v1334 = vmax.f32 %v1270, 0.0
        %v1335 = vmax.f32 %v1271, 0.0
        %v1336 = vmax.f32 %v1272, 0.0
        %v1337 = vmax.f32 %v1273, 0.0
        %v1338 = vmax.f32 %v1274, 0.0
        %v1339 = vmax.f32 %v1275, 0.0
        %v1340 = vmax.f32 %v1276, 0.0
        %v1341 = vmax.f32 %v1277, 0.0
        %v1342 = vmax.f32 %v1278, 0.0
        %v1343 = vmax.f32 %v1279, 0.0
        %v1344 = vmax.f32 %v1280, 0.0
        %v1345 = vmax.f32 %v1281, 0.0
        %v1346 = vmax.f32 %v1282, 0.0
        %v1347 = vmax.f32 %v1283, 0.0
        %v1348 = vmax.f32 %v1284, 0.0
        %v1349 = vmax.f32 %v1285, 0.0
        %v1350 = vmax.f32 %v1286, 0.0
        %v1351 = vmax.f32 %v1287, 0.0
        %v1352 = vmax.f32 %v1288, 0.0
        %v1353 = vmax.f32 %v1289, 0.0
        %v1354 = vmax.f32 %v1290, 0.0
        %v1355 = vmax.f32 %v1291, 0.0
        %v1356 = vmax.f32 %v1292, 0.0
        %v1357 = vmax.f32 %v1293, 0.0
        %v1358 = vmax.f32 %v1294, 0.0
        %v1359 = vmax.f32 %v1295, 0.0
        %v1360 = vmax.f32 %v1296, 0.0
        %v1361 = vmax.f32 %v1297, 0.0
        %v1362 = vmax.f32 %v1298, 0.0
        %v1363 = vmax.f32 %v1299, 0.0
        %v1364 = vmax.f32 %v1300, 0.0
        %v1365 = vmax.f32 %v1301, 0.0
        %v1366 = vmax.f32 %v1302, 0.0
        %v1367 = vmax.f32 %v1303, 0.0
        %v1368 = vmax.f32 %v1304, 0.0
        %v1369 = vmax.f32 %v1305, 0.0
        %v1370 = vmax.f32 %v1306, 0.0
        %v1371 = vmax.f32 %v1307, 0.0
        %v1372 = vmax.f32 %v1308, 0.0
        %v1373 = vmax.f32 %v1309, 0.0
        %v1374 = vmax.f32 %v1310, 0.0
        %v1375 = vmax.f32 %v1311, 0.0
        %v1376 = vmax.f32 %v1312, 0.0
        %v1377 = vmax.f32 %v1313, 0.0
        %v1378 = vmax.f32 %v1314, 0.0
        %v1379 = vmax.f32 %v1315, 0.0
        %v1380 = vmax.f32 %v1316, 0.0
        %v1381 = vmax.f32 %v1317, 0.0
        %v1382 = vmax.f32 %v1318, 0.0
        %v1383 = vmax.f32 %v1319, 0.0
        %v1384 = vmax.f32 %v1320, 0.0
        %v1385 = vmax.f32 %v1321, 0.0
        %v1386 = vmax.f32 %v1322, 0.0
        %v1387 = vmax.f32 %v1323, 0.0
        %v1388 = vmax.f32 %v1324, 0.0
        %v1389 = vmax.f32 %v1325, 0.0
        %v1390 = vmax.f32 %v1326, 0.0
        %v1391 = vpack.c.bf16 %v1327, %v1327
        %v1392 = vpack.c.bf16 %v1328, %v1328
        %v1393 = vpack.c.bf16 %v1329, %v1329
        %v1394 = vpack.c.bf16 %v1330, %v1330
        %v1395 = vpack.c.bf16 %v1331, %v1331
        %v1396 = vpack.c.bf16 %v1332, %v1332
        %v1397 = vpack.c.bf16 %v1333, %v1333
        %v1398 = vpack.c.bf16 %v1334, %v1334
        %v1399 = vpack.c.bf16 %v1335, %v1335
        %v1400 = vpack.c.bf16 %v1336, %v1336
        %v1401 = vpack.c.bf16 %v1337, %v1337
        %v1402 = vpack.c.bf16 %v1338, %v1338
        %v1403 = vpack.c.bf16 %v1339, %v1339
        %v1404 = vpack.c.bf16 %v1340, %v1340
        %v1405 = vpack.c.bf16 %v1341, %v1341
        %v1406 = vpack.c.bf16 %v1342, %v1342
        %v1407 = vpack.c.bf16 %v1343, %v1343
        %v1408 = vpack.c.bf16 %v1344, %v1344
        %v1409 = vpack.c.bf16 %v1345, %v1345
        %v1410 = vpack.c.bf16 %v1346, %v1346
        %v1411 = vpack.c.bf16 %v1347, %v1347
        %v1412 = vpack.c.bf16 %v1348, %v1348
        %v1413 = vpack.c.bf16 %v1349, %v1349
        %v1414 = vpack.c.bf16 %v1350, %v1350
        %v1415 = vpack.c.bf16 %v1351, %v1351
        %v1416 = vpack.c.bf16 %v1352, %v1352
        %v1417 = vpack.c.bf16 %v1353, %v1353
        %v1418 = vpack.c.bf16 %v1354, %v1354
        %v1419 = vpack.c.bf16 %v1355, %v1355
        %v1420 = vpack.c.bf16 %v1356, %v1356
        %v1421 = vpack.c.bf16 %v1357, %v1357
        %v1422 = vpack.c.bf16 %v1358, %v1358
        %v1423 = vpack.c.bf16 %v1359, %v1359
        %v1424 = vpack.c.bf16 %v1360, %v1360
        %v1425 = vpack.c.bf16 %v1361, %v1361
        %v1426 = vpack.c.bf16 %v1362, %v1362
        %v1427 = vpack.c.bf16 %v1363, %v1363
        %v1428 = vpack.c.bf16 %v1364, %v1364
        %v1429 = vpack.c.bf16 %v1365, %v1365
        %v1430 = vpack.c.bf16 %v1366, %v1366
        %v1431 = vpack.c.bf16 %v1367, %v1367
        %v1432 = vpack.c.bf16 %v1368, %v1368
        %v1433 = vpack.c.bf16 %v1369, %v1369
        %v1434 = vpack.c.bf16 %v1370, %v1370
        %v1435 = vpack.c.bf16 %v1371, %v1371
        %v1436 = vpack.c.bf16 %v1372, %v1372
        %v1437 = vpack.c.bf16 %v1373, %v1373
        %v1438 = vpack.c.bf16 %v1374, %v1374
        %v1439 = vpack.c.bf16 %v1375, %v1375
        %v1440 = vpack.c.bf16 %v1376, %v1376
        %v1441 = vpack.c.bf16 %v1377, %v1377
        %v1442 = vpack.c.bf16 %v1378, %v1378
        %v1443 = vpack.c.bf16 %v1379, %v1379
        %v1444 = vpack.c.bf16 %v1380, %v1380
        %v1445 = vpack.c.bf16 %v1381, %v1381
        %v1446 = vpack.c.bf16 %v1382, %v1382
        %v1447 = vpack.c.bf16 %v1383, %v1383
        %v1448 = vpack.c.bf16 %v1384, %v1384
        %v1449 = vpack.c.bf16 %v1385, %v1385
        %v1450 = vpack.c.bf16 %v1386, %v1386
        %v1451 = vpack.c.bf16 %v1387, %v1387
        %v1452 = vpack.c.bf16 %v1388, %v1388
        %v1453 = vpack.c.bf16 %v1389, %v1389
        %v1454 = vpack.c.bf16 %v1390, %v1390
        %1455 = vst [vmem:[%s287] sm:$0xf] %v1391
        %1456 = vst [vmem:[%s287 + $0x4] sm:$0xf] %v1392
        %1457 = vst [vmem:[%s287 + $0x8] sm:$0xf] %v1393
        %1458 = vst [vmem:[%s287 + $0xc] sm:$0xf] %v1394
        %1459 = vst [vmem:[%s287 + $0x10] sm:$0xf] %v1395
        %1460 = vst [vmem:[%s287 + $0x14] sm:$0xf] %v1396
        %1461 = vst [vmem:[%s287 + $0x18] sm:$0xf] %v1397
        %1462 = vst [vmem:[%s287 + $0x1c] sm:$0xf] %v1398
        %1463 = vst [vmem:[%s287 + $0x20] sm:$0xf] %v1399
        %1464 = vst [vmem:[%s287 + $0x24] sm:$0xf] %v1400
        %1465 = vst [vmem:[%s287 + $0x28] sm:$0xf] %v1401
        %1466 = vst [vmem:[%s287 + $0x2c] sm:$0xf] %v1402
        %1467 = vst [vmem:[%s287 + $0x30] sm:$0xf] %v1403
        %1468 = vst [vmem:[%s287 + $0x34] sm:$0xf] %v1404
        %1469 = vst [vmem:[%s287 + $0x38] sm:$0xf] %v1405
        %1470 = vst [vmem:[%s287 + $0x3c] sm:$0xf] %v1406
        %1471 = vst [vmem:[%s287 + $0x40] sm:$0xf] %v1407
        %1472 = vst [vmem:[%s287 + $0x44] sm:$0xf] %v1408
        %1473 = vst [vmem:[%s287 + $0x48] sm:$0xf] %v1409
        %1474 = vst [vmem:[%s287 + $0x4c] sm:$0xf] %v1410
        %1475 = vst [vmem:[%s287 + $0x50] sm:$0xf] %v1411
        %1476 = vst [vmem:[%s287 + $0x54] sm:$0xf] %v1412
        %1477 = vst [vmem:[%s287 + $0x58] sm:$0xf] %v1413
        %1478 = vst [vmem:[%s287 + $0x5c] sm:$0xf] %v1414
        %1479 = vst [vmem:[%s287 + $0x60] sm:$0xf] %v1415
        %1480 = vst [vmem:[%s287 + $0x64] sm:$0xf] %v1416
        %1481 = vst [vmem:[%s287 + $0x68] sm:$0xf] %v1417
        %1482 = vst [vmem:[%s287 + $0x6c] sm:$0xf] %v1418
        %1483 = vst [vmem:[%s287 + $0x70] sm:$0xf] %v1419
        %1484 = vst [vmem:[%s287 + $0x74] sm:$0xf] %v1420
        %1485 = vst [vmem:[%s287 + $0x78] sm:$0xf] %v1421
        %1486 = vst [vmem:[%s287 + $0x7c] sm:$0xf] %v1422
        %1487 = vst [vmem:[%s287 + $0x80] sm:$0xf] %v1423
        %1488 = vst [vmem:[%s287 + $0x84] sm:$0xf] %v1424
        %1489 = vst [vmem:[%s287 + $0x88] sm:$0xf] %v1425
        %1490 = vst [vmem:[%s287 + $0x8c] sm:$0xf] %v1426
        %1491 = vst [vmem:[%s287 + $0x90] sm:$0xf] %v1427
        %1492 = vst [vmem:[%s287 + $0x94] sm:$0xf] %v1428
        %1493 = vst [vmem:[%s287 + $0x98] sm:$0xf] %v1429
        %1494 = vst [vmem:[%s287 + $0x9c] sm:$0xf] %v1430
        %1495 = vst [vmem:[%s287 + $0xa0] sm:$0xf] %v1431
        %1496 = vst [vmem:[%s287 + $0xa4] sm:$0xf] %v1432
        %1497 = vst [vmem:[%s287 + $0xa8] sm:$0xf] %v1433
        %1498 = vst [vmem:[%s287 + $0xac] sm:$0xf] %v1434
        %1499 = vst [vmem:[%s287 + $0xb0] sm:$0xf] %v1435
        %1500 = vst [vmem:[%s287 + $0xb4] sm:$0xf] %v1436
        %1501 = vst [vmem:[%s287 + $0xb8] sm:$0xf] %v1437
        %1502 = vst [vmem:[%s287 + $0xbc] sm:$0xf] %v1438
        %1503 = vst [vmem:[%s287 + $0xc0] sm:$0xf] %v1439
        %1504 = vst [vmem:[%s287 + $0xc4] sm:$0xf] %v1440
        %1505 = vst [vmem:[%s287 + $0xc8] sm:$0xf] %v1441
        %1506 = vst [vmem:[%s287 + $0xcc] sm:$0xf] %v1442
        %1507 = vst [vmem:[%s287 + $0xd0] sm:$0xf] %v1443
        %1508 = vst [vmem:[%s287 + $0xd4] sm:$0xf] %v1444
        %1509 = vst [vmem:[%s287 + $0xd8] sm:$0xf] %v1445
        %1510 = vst [vmem:[%s287 + $0xdc] sm:$0xf] %v1446
        %1511 = vst [vmem:[%s287 + $0xe0] sm:$0xf] %v1447
        %1512 = vst [vmem:[%s287 + $0xe4] sm:$0xf] %v1448
        %1513 = vst [vmem:[%s287 + $0xe8] sm:$0xf] %v1449
        %1514 = vst [vmem:[%s287 + $0xec] sm:$0xf] %v1450
        %1515 = vst [vmem:[%s287 + $0xf0] sm:$0xf] %v1451
        %1516 = vst [vmem:[%s287 + $0xf4] sm:$0xf] %v1452
        %1517 = vst [vmem:[%s287 + $0xf8] sm:$0xf] %v1453
        %1518 = vst [vmem:[%s287 + $0xfc] sm:$0xf] %v1454
        %s1519 = sand.u32 %s161, 1
        %s1520 = scalar_lea.sflag [#allocation3], %s1519
        %s1521 = sand.u32 %s161, 1
        %s1522 = smul.addr %s1521, 256
        %s1523 = scalar_lea.vmem [#allocation2], %s1522
        // Predicated region
        $region37: #{tpu_custom_call.1} parent=35 // pred_check
          %p1524 = pneg %p171
        $region38: #{tpu_custom_call.1} parent=35 // pred_check_branch
          %1526 = sbr.rel (%p1524) target = $region40
        $region39: #{tpu_custom_call.1} parent=35 // pred_region
          %s1527 = smul.u32 64, %s24
          %1529 = vsyncadd %s1520, 0
          %s1530 = sadd.s32 %s25, %s1527
          %s1531 = smul.addr %s23, 3136
          %s1532 = sadd.s32 %s1530, %s1531
          %s1533 = smul.addr %s1532, 4
          %s1534 = scalar_lea.hbm %s4, %s1533
          %s1535 = sshll.u32 %s1523, 4
          %s1536 = int_to_ptr.vmem [resolvable:$true] %s1535
          %s1537 = sshll.u32 %s1534, 4
          %s1538 = int_to_ptr.hbm [resolvable:$true] %s1537
          %1543 = dma.vmem_to_hbm [thread:$0]  %s1536, 4096, %s1538, %s1520, 64, 64, 4
        $region40: #{tpu_custom_call.1} parent=35 // pred_fallthru
          _
      $region36: #{tpu_custom_call.1} parent=5 // pred_fallthru
        _
      %p1544 = scmp.le.s32.totalorder 2, %s13
      // Predicated region
      $region41: #{tpu_custom_call.1} parent=5 // pred_check
        %p1545 = pneg %p1544
      $region42: #{tpu_custom_call.1} parent=5 // pred_check_branch
        %1547 = sbr.rel (%p1545) target = $region44
      $region43: #{tpu_custom_call.1} parent=5 // pred_region
        %s1548 = ssub.s32 %s13, 2
        // Predicated region
        $region45: #{tpu_custom_call.1} parent=43 // pred_check
          %p1549 = pneg %p177
        $region46: #{tpu_custom_call.1} parent=43 // pred_check_branch
          %1551 = sbr.rel (%p1549) target = $region48
        $region47: #{tpu_custom_call.1} parent=43 // pred_region
          %s1552 = sand.u32 %s162, 1
          %s1553 = scalar_lea.sflag [#allocation3], %s1552
          %s1554 = sand.u32 %s162, 1
          %s1555 = smul.addr %s1554, 256
          %s1556 = scalar_lea.vmem [#allocation2], %s1555
          %1558 = dma.done %s1553, 4096
        $region48: #{tpu_custom_call.1} parent=43 // pred_fallthru
          _
      $region44: #{tpu_custom_call.1} parent=5 // pred_fallthru
        _
    $region6: #{tpu_custom_call.1} parent=1 // loop_footer
      %s17 = sadd.s32 1, %s13
    $region7: #{tpu_custom_call.1} parent=1 // loop_footer_branch
      %12 = sbr.rel target = $region3
    $region8: #{tpu_custom_call.1} parent=1 // loop_exit
      _
    %1559 = vsyncpa [#allocation3], 1
    %s1560 = scalar_lea.sflag [#allocation3], 1
    %1561 = vsyncpa %s1560, 1

</llo_original>
